<compile_context>
chip_gen: v7x
topology: tpu7x:2x2x1
jax: 0.10.0
libtpu: 0.0.40
codegen_flags: <defaults>
</compile_context>

<pallas_src>
from functools import partial

import numpy as np
import jax
import jax.numpy as jnp
from jax.experimental import pallas as pl
from jax.experimental.pallas import tpu as pltpu

# vocab: 'S','E','P' + 26 lowercase letters
N_CLASS = 29
N_HIDDEN = 128
LANE = 128
SUBLANE = 8


def seq2seq_kernel(enc_x_ref, h0_ref, dec_x_ref,
                   w_ih_e_ref, w_hh_e_ref, b_e_ref,
                   w_ih_d_ref, w_hh_d_ref, b_d_ref,
                   fc_w_ref, fc_b_ref,
                   out_ref, *, t_enc, t_dec, b_pad):
    """All refs live in VMEM (full-array blocks, no grid).

    enc_x_ref : (Te*Bp, Cp)  bf16     h0_ref : (Bp, H)  f32
    dec_x_ref : (Td*Bp, Cp)  bf16
    w_ih_*    : (Cp, H)      bf16     w_hh_* : (H, H)   bf16
    b_*       : (1, H)       f32      (b_ih + b_hh, pre-summed)
    fc_w      : (H, 128)     bf16     fc_b   : (1, 128) f32   (lane-padded)
    out_ref   : (Td*Bp, 128) f32
    """
    f32 = jnp.float32
    bf16 = jnp.bfloat16

    # ---- hoisted input projections: one batched MXU matmul per sequence ----
    enc_pre = jnp.dot(enc_x_ref[...], w_ih_e_ref[...],
                      preferred_element_type=f32) + b_e_ref[...]   # (Te*Bp, H)
    dec_pre = jnp.dot(dec_x_ref[...], w_ih_d_ref[...],
                      preferred_element_type=f32) + b_d_ref[...]   # (Td*Bp, H)

    w_hh_e = w_hh_e_ref[...]
    w_hh_d = w_hh_d_ref[...]

    h = h0_ref[...]                                                # (Bp, H) f32

    # ---- encoder: h_t = tanh(pre_t + h_{t-1} W_hh), fully unrolled ---------
    for t in range(t_enc):
        rec = jnp.dot(h.astype(bf16), w_hh_e, preferred_element_type=f32)
        h = jnp.tanh(enc_pre[t * b_pad:(t + 1) * b_pad, :] + rec)

    # ---- decoder: same recurrence; stash hidden states, fc afterwards ------
    hs = []
    for t in range(t_dec):
        rec = jnp.dot(h.astype(bf16), w_hh_d, preferred_element_type=f32)
        h = jnp.tanh(dec_pre[t * b_pad:(t + 1) * b_pad, :] + rec)
        hs.append(h)
    hs = jnp.concatenate(hs, axis=0)                               # (Td*Bp, H)

    # ---- single fc matmul + one lane-dense store ----------------------------
    logits = jnp.dot(hs.astype(bf16), fc_w_ref[...],
                     preferred_element_type=f32) + fc_b_ref[...]
    out_ref[...] = logits


def _pad_axis(x, axis, size):
    pad = size - x.shape[axis]
    if pad <= 0:
        return x
    widths = [(0, 0)] * x.ndim
    widths[axis] = (0, pad)
    return jnp.pad(x, widths)


def init_params(key):
    """Deterministic parameter init (uniform +-1/sqrt(n_hidden), like PyTorch)."""
    k = 1.0 / np.sqrt(N_HIDDEN)
    names_shapes = [
        ("w_ih_e", (N_HIDDEN, N_CLASS)), ("w_hh_e", (N_HIDDEN, N_HIDDEN)),
        ("b_ih_e", (N_HIDDEN,)),         ("b_hh_e", (N_HIDDEN,)),
        ("w_ih_d", (N_HIDDEN, N_CLASS)), ("w_hh_d", (N_HIDDEN, N_HIDDEN)),
        ("b_ih_d", (N_HIDDEN,)),         ("b_hh_d", (N_HIDDEN,)),
        ("fc_w",   (N_CLASS, N_HIDDEN)), ("fc_b",   (N_CLASS,)),
    ]
    keys = jax.random.split(key, len(names_shapes))
    return {name: jax.random.uniform(kk, shape, jnp.float32, -k, k)
            for kk, (name, shape) in zip(keys, names_shapes)}


def seq2seq_forward(enc_input, enc_hidden, dec_input, params):
    """enc_input: (B, Te, n_class); enc_hidden: (1, B, n_hidden);
    dec_input: (B, Td, n_class).  Returns (Td, B, n_class) float32."""
    batch, t_enc, n_class = enc_input.shape
    t_dec = dec_input.shape[1]
    b_pad = max(SUBLANE, -(-batch // SUBLANE) * SUBLANE)   # pad batch to sublanes
    c_pad = max(LANE, -(-n_class // LANE) * LANE)          # pad class dim to lanes

    def prep_seq(x):
        # (B, T, C) -> time-major, batch/lane padded, flattened lane-dense slab
        x = jnp.transpose(x, (1, 0, 2)).astype(jnp.float32)          # (T, B, C)
        x = _pad_axis(_pad_axis(x, 1, b_pad), 2, c_pad)              # (T, Bp, Cp)
        return x.reshape(x.shape[0] * b_pad, c_pad).astype(jnp.bfloat16)

    enc_x = prep_seq(enc_input)                                      # (Te*Bp, Cp)
    dec_x = prep_seq(dec_input)                                      # (Td*Bp, Cp)
    h0 = _pad_axis(enc_hidden[0].astype(jnp.float32), 0, b_pad)      # (Bp, H)

    # weights pre-transposed to (in_features, out_features); matmul operands bf16
    w_ih_e = _pad_axis(params["w_ih_e"].T, 0, c_pad).astype(jnp.bfloat16)
    w_ih_d = _pad_axis(params["w_ih_d"].T, 0, c_pad).astype(jnp.bfloat16)
    w_hh_e = params["w_hh_e"].T.astype(jnp.bfloat16)
    w_hh_d = params["w_hh_d"].T.astype(jnp.bfloat16)
    b_e = (params["b_ih_e"] + params["b_hh_e"]).reshape(1, N_HIDDEN).astype(jnp.float32)
    b_d = (params["b_ih_d"] + params["b_hh_d"]).reshape(1, N_HIDDEN).astype(jnp.float32)
    fc_w = _pad_axis(params["fc_w"].T, 1, LANE).astype(jnp.bfloat16)           # (H, 128)
    fc_b = _pad_axis(params["fc_b"].reshape(1, -1).astype(jnp.float32), 1, LANE)

    vmem = pl.BlockSpec(memory_space=pltpu.MemorySpace.VMEM)
    kernel = partial(seq2seq_kernel, t_enc=t_enc, t_dec=t_dec, b_pad=b_pad)

    out = pl.pallas_call(
        kernel,
        out_shape=jax.ShapeDtypeStruct((t_dec * b_pad, LANE), jnp.float32),
        in_specs=[vmem] * 11,
        out_specs=vmem,
    )(
        enc_x, h0, dec_x,
        w_ih_e, w_hh_e, b_e,
        w_ih_d, w_hh_d, b_d,
        fc_w, fc_b,
    )

    # strip batch/lane padding back to (Td, B, n_class)
    return out.reshape(t_dec, b_pad, LANE)[:, :batch, :n_class]


def seq2seq_reference(enc_input, enc_hidden, dec_input, params):
    """Pure-JAX f32 reference of the PyTorch forward, for a sanity check."""
    enc_x = jnp.transpose(enc_input, (1, 0, 2))
    dec_x = jnp.transpose(dec_input, (1, 0, 2))
    h = enc_hidden[0]

    def rnn_step(w_ih, w_hh, b_ih, b_hh, x, h):
        return jnp.tanh(x @ w_ih.T + b_ih + h @ w_hh.T + b_hh)

    for t in range(enc_x.shape[0]):
        h = rnn_step(params["w_ih_e"], params["w_hh_e"],
                     params["b_ih_e"], params["b_hh_e"], enc_x[t], h)
    outs = []
    for t in range(dec_x.shape[0]):
        h = rnn_step(params["w_ih_d"], params["w_hh_d"],
                     params["b_ih_d"], params["b_hh_d"], dec_x[t], h)
        outs.append(h @ params["fc_w"].T + params["fc_b"])
    return jnp.stack(outs, axis=0)


if __name__ == "__main__":
    key = jax.random.PRNGKey(0)
    k_par, k_enc, k_dec = jax.random.split(key, 3)

    params = init_params(k_par)

    batch = 2
    seq_enc = 8
    seq_dec = 8

    # one-hot style inputs (like the original char one-hot batches)
    enc_ids = jax.random.randint(k_enc, (batch, seq_enc), 0, N_CLASS)
    dec_ids = jax.random.randint(k_dec, (batch, seq_dec), 0, N_CLASS)
    enc_input = jax.nn.one_hot(enc_ids, N_CLASS, dtype=jnp.float32)  # (B, Te, n_class)
    dec_input = jax.nn.one_hot(dec_ids, N_CLASS, dtype=jnp.float32)  # (B, Td, n_class)
    enc_hidden = jnp.zeros((1, batch, N_HIDDEN), jnp.float32)        # (1, B, n_hidden)

    out = seq2seq_forward(enc_input, enc_hidden, dec_input, params)
    out = jax.block_until_ready(out)

    ref = seq2seq_reference(enc_input, enc_hidden, dec_input, params)
    assert out.shape == (seq_dec, batch, N_CLASS)
    # bf16 MXU operands with f32 accumulation -> slightly looser tolerance
    assert np.allclose(np.asarray(out), np.asarray(ref), atol=2e-2, rtol=2e-2)

    print("KERNEL_OK")
</pallas_src>

<mosaic_0001>
module attributes {stable_mosaic.version = 11 : i64} {
  func.func @seq2seq_kernel(%arg0: memref<64x128xbf16, #tpu.memory_space<vmem>>, %arg1: memref<8x128xf32, #tpu.memory_space<vmem>>, %arg2: memref<64x128xbf16, #tpu.memory_space<vmem>>, %arg3: memref<128x128xbf16, #tpu.memory_space<vmem>>, %arg4: memref<128x128xbf16, #tpu.memory_space<vmem>>, %arg5: memref<1x128xf32, #tpu.memory_space<vmem>>, %arg6: memref<128x128xbf16, #tpu.memory_space<vmem>>, %arg7: memref<128x128xbf16, #tpu.memory_space<vmem>>, %arg8: memref<1x128xf32, #tpu.memory_space<vmem>>, %arg9: memref<128x128xbf16, #tpu.memory_space<vmem>>, %arg10: memref<1x128xf32, #tpu.memory_space<vmem>>, %arg11: memref<64x128xf32, #tpu.memory_space<vmem>>) attributes {dimension_semantics = [], scalar_prefetch = 0 : i64, scratch_operands = 0 : i64, tpu.core_type = #tpu.core_type<tc>} {
    %c0 = arith.constant 0 : index
    %c0_0 = arith.constant 0 : index
    %0 = vector.load %arg0[%c0, %c0_0] : memref<64x128xbf16, #tpu.memory_space<vmem>>, vector<64x128xbf16>
    %c0_1 = arith.constant 0 : index
    %c0_2 = arith.constant 0 : index
    %1 = vector.load %arg3[%c0_1, %c0_2] : memref<128x128xbf16, #tpu.memory_space<vmem>>, vector<128x128xbf16>
    %cst = arith.constant dense<0.000000e+00> : vector<64x128xf32>
    %2 = tpu.matmul %0, %1, %cst {dimension_numbers = #tpu.dot_dimension_numbers<[1], [0], [0], [1], [0, 0, 1, 1], [], []>} : vector<64x128xbf16>, vector<128x128xbf16>, vector<64x128xf32> -> vector<64x128xf32>
    %c0_3 = arith.constant 0 : index
    %c0_4 = arith.constant 0 : index
    %3 = vector.load %arg5[%c0_3, %c0_4] : memref<1x128xf32, #tpu.memory_space<vmem>>, vector<1x128xf32>
    %4 = vector.broadcast %3 : vector<1x128xf32> to vector<64x128xf32>
    %5 = arith.addf %2, %4 : vector<64x128xf32>
    %c0_5 = arith.constant 0 : index
    %c0_6 = arith.constant 0 : index
    %6 = vector.load %arg2[%c0_5, %c0_6] : memref<64x128xbf16, #tpu.memory_space<vmem>>, vector<64x128xbf16>
    %c0_7 = arith.constant 0 : index
    %c0_8 = arith.constant 0 : index
    %7 = vector.load %arg6[%c0_7, %c0_8] : memref<128x128xbf16, #tpu.memory_space<vmem>>, vector<128x128xbf16>
    %cst_9 = arith.constant dense<0.000000e+00> : vector<64x128xf32>
    %8 = tpu.matmul %6, %7, %cst_9 {dimension_numbers = #tpu.dot_dimension_numbers<[1], [0], [0], [1], [0, 0, 1, 1], [], []>} : vector<64x128xbf16>, vector<128x128xbf16>, vector<64x128xf32> -> vector<64x128xf32>
    %c0_10 = arith.constant 0 : index
    %c0_11 = arith.constant 0 : index
    %9 = vector.load %arg8[%c0_10, %c0_11] : memref<1x128xf32, #tpu.memory_space<vmem>>, vector<1x128xf32>
    %10 = vector.broadcast %9 : vector<1x128xf32> to vector<64x128xf32>
    %11 = arith.addf %8, %10 : vector<64x128xf32>
    %c0_12 = arith.constant 0 : index
    %c0_13 = arith.constant 0 : index
    %12 = vector.load %arg4[%c0_12, %c0_13] : memref<128x128xbf16, #tpu.memory_space<vmem>>, vector<128x128xbf16>
    %c0_14 = arith.constant 0 : index
    %c0_15 = arith.constant 0 : index
    %13 = vector.load %arg7[%c0_14, %c0_15] : memref<128x128xbf16, #tpu.memory_space<vmem>>, vector<128x128xbf16>
    %c0_16 = arith.constant 0 : index
    %c0_17 = arith.constant 0 : index
    %14 = vector.load %arg1[%c0_16, %c0_17] : memref<8x128xf32, #tpu.memory_space<vmem>>, vector<8x128xf32>
    %15 = arith.truncf %14 : vector<8x128xf32> to vector<8x128xbf16>
    %cst_18 = arith.constant dense<0.000000e+00> : vector<8x128xf32>
    %16 = tpu.matmul %15, %12, %cst_18 {dimension_numbers = #tpu.dot_dimension_numbers<[1], [0], [0], [1], [0, 0, 1, 1], [], []>} : vector<8x128xbf16>, vector<128x128xbf16>, vector<8x128xf32> -> vector<8x128xf32>
    %17 = vector.extract_strided_slice %5 {offsets = [0, 0], sizes = [8, 128], strides = [1, 1]} : vector<64x128xf32> to vector<8x128xf32>
    %18 = arith.addf %17, %16 : vector<8x128xf32>
    %19 = math.tanh %18 : vector<8x128xf32>
    %20 = arith.truncf %19 : vector<8x128xf32> to vector<8x128xbf16>
    %cst_19 = arith.constant dense<0.000000e+00> : vector<8x128xf32>
    %21 = tpu.matmul %20, %12, %cst_19 {dimension_numbers = #tpu.dot_dimension_numbers<[1], [0], [0], [1], [0, 0, 1, 1], [], []>} : vector<8x128xbf16>, vector<128x128xbf16>, vector<8x128xf32> -> vector<8x128xf32>
    %22 = vector.extract_strided_slice %5 {offsets = [8, 0], sizes = [8, 128], strides = [1, 1]} : vector<64x128xf32> to vector<8x128xf32>
    %23 = arith.addf %22, %21 : vector<8x128xf32>
    %24 = math.tanh %23 : vector<8x128xf32>
    %25 = arith.truncf %24 : vector<8x128xf32> to vector<8x128xbf16>
    %cst_20 = arith.constant dense<0.000000e+00> : vector<8x128xf32>
    %26 = tpu.matmul %25, %12, %cst_20 {dimension_numbers = #tpu.dot_dimension_numbers<[1], [0], [0], [1], [0, 0, 1, 1], [], []>} : vector<8x128xbf16>, vector<128x128xbf16>, vector<8x128xf32> -> vector<8x128xf32>
    %27 = vector.extract_strided_slice %5 {offsets = [16, 0], sizes = [8, 128], strides = [1, 1]} : vector<64x128xf32> to vector<8x128xf32>
    %28 = arith.addf %27, %26 : vector<8x128xf32>
    %29 = math.tanh %28 : vector<8x128xf32>
    %30 = arith.truncf %29 : vector<8x128xf32> to vector<8x128xbf16>
    %cst_21 = arith.constant dense<0.000000e+00> : vector<8x128xf32>
    %31 = tpu.matmul %30, %12, %cst_21 {dimension_numbers = #tpu.dot_dimension_numbers<[1], [0], [0], [1], [0, 0, 1, 1], [], []>} : vector<8x128xbf16>, vector<128x128xbf16>, vector<8x128xf32> -> vector<8x128xf32>
    %32 = vector.extract_strided_slice %5 {offsets = [24, 0], sizes = [8, 128], strides = [1, 1]} : vector<64x128xf32> to vector<8x128xf32>
    %33 = arith.addf %32, %31 : vector<8x128xf32>
    %34 = math.tanh %33 : vector<8x128xf32>
    %35 = arith.truncf %34 : vector<8x128xf32> to vector<8x128xbf16>
    %cst_22 = arith.constant dense<0.000000e+00> : vector<8x128xf32>
    %36 = tpu.matmul %35, %12, %cst_22 {dimension_numbers = #tpu.dot_dimension_numbers<[1], [0], [0], [1], [0, 0, 1, 1], [], []>} : vector<8x128xbf16>, vector<128x128xbf16>, vector<8x128xf32> -> vector<8x128xf32>
    %37 = vector.extract_strided_slice %5 {offsets = [32, 0], sizes = [8, 128], strides = [1, 1]} : vector<64x128xf32> to vector<8x128xf32>
    %38 = arith.addf %37, %36 : vector<8x128xf32>
    %39 = math.tanh %38 : vector<8x128xf32>
    %40 = arith.truncf %39 : vector<8x128xf32> to vector<8x128xbf16>
    %cst_23 = arith.constant dense<0.000000e+00> : vector<8x128xf32>
    %41 = tpu.matmul %40, %12, %cst_23 {dimension_numbers = #tpu.dot_dimension_numbers<[1], [0], [0], [1], [0, 0, 1, 1], [], []>} : vector<8x128xbf16>, vector<128x128xbf16>, vector<8x128xf32> -> vector<8x128xf32>
    %42 = vector.extract_strided_slice %5 {offsets = [40, 0], sizes = [8, 128], strides = [1, 1]} : vector<64x128xf32> to vector<8x128xf32>
    %43 = arith.addf %42, %41 : vector<8x128xf32>
    %44 = math.tanh %43 : vector<8x128xf32>
    %45 = arith.truncf %44 : vector<8x128xf32> to vector<8x128xbf16>
    %cst_24 = arith.constant dense<0.000000e+00> : vector<8x128xf32>
    %46 = tpu.matmul %45, %12, %cst_24 {dimension_numbers = #tpu.dot_dimension_numbers<[1], [0], [0], [1], [0, 0, 1, 1], [], []>} : vector<8x128xbf16>, vector<128x128xbf16>, vector<8x128xf32> -> vector<8x128xf32>
    %47 = vector.extract_strided_slice %5 {offsets = [48, 0], sizes = [8, 128], strides = [1, 1]} : vector<64x128xf32> to vector<8x128xf32>
    %48 = arith.addf %47, %46 : vector<8x128xf32>
    %49 = math.tanh %48 : vector<8x128xf32>
    %50 = arith.truncf %49 : vector<8x128xf32> to vector<8x128xbf16>
    %cst_25 = arith.constant dense<0.000000e+00> : vector<8x128xf32>
    %51 = tpu.matmul %50, %12, %cst_25 {dimension_numbers = #tpu.dot_dimension_numbers<[1], [0], [0], [1], [0, 0, 1, 1], [], []>} : vector<8x128xbf16>, vector<128x128xbf16>, vector<8x128xf32> -> vector<8x128xf32>
    %52 = vector.extract_strided_slice %5 {offsets = [56, 0], sizes = [8, 128], strides = [1, 1]} : vector<64x128xf32> to vector<8x128xf32>
    %53 = arith.addf %52, %51 : vector<8x128xf32>
    %54 = math.tanh %53 : vector<8x128xf32>
    %55 = arith.truncf %54 : vector<8x128xf32> to vector<8x128xbf16>
    %cst_26 = arith.constant dense<0.000000e+00> : vector<8x128xf32>
    %56 = tpu.matmul %55, %13, %cst_26 {dimension_numbers = #tpu.dot_dimension_numbers<[1], [0], [0], [1], [0, 0, 1, 1], [], []>} : vector<8x128xbf16>, vector<128x128xbf16>, vector<8x128xf32> -> vector<8x128xf32>
    %57 = vector.extract_strided_slice %11 {offsets = [0, 0], sizes = [8, 128], strides = [1, 1]} : vector<64x128xf32> to vector<8x128xf32>
    %58 = arith.addf %57, %56 : vector<8x128xf32>
    %59 = math.tanh %58 : vector<8x128xf32>
    %60 = arith.truncf %59 : vector<8x128xf32> to vector<8x128xbf16>
    %cst_27 = arith.constant dense<0.000000e+00> : vector<8x128xf32>
    %61 = tpu.matmul %60, %13, %cst_27 {dimension_numbers = #tpu.dot_dimension_numbers<[1], [0], [0], [1], [0, 0, 1, 1], [], []>} : vector<8x128xbf16>, vector<128x128xbf16>, vector<8x128xf32> -> vector<8x128xf32>
    %62 = vector.extract_strided_slice %11 {offsets = [8, 0], sizes = [8, 128], strides = [1, 1]} : vector<64x128xf32> to vector<8x128xf32>
    %63 = arith.addf %62, %61 : vector<8x128xf32>
    %64 = math.tanh %63 : vector<8x128xf32>
    %65 = arith.truncf %64 : vector<8x128xf32> to vector<8x128xbf16>
    %cst_28 = arith.constant dense<0.000000e+00> : vector<8x128xf32>
    %66 = tpu.matmul %65, %13, %cst_28 {dimension_numbers = #tpu.dot_dimension_numbers<[1], [0], [0], [1], [0, 0, 1, 1], [], []>} : vector<8x128xbf16>, vector<128x128xbf16>, vector<8x128xf32> -> vector<8x128xf32>
    %67 = vector.extract_strided_slice %11 {offsets = [16, 0], sizes = [8, 128], strides = [1, 1]} : vector<64x128xf32> to vector<8x128xf32>
    %68 = arith.addf %67, %66 : vector<8x128xf32>
    %69 = math.tanh %68 : vector<8x128xf32>
    %70 = arith.truncf %69 : vector<8x128xf32> to vector<8x128xbf16>
    %cst_29 = arith.constant dense<0.000000e+00> : vector<8x128xf32>
    %71 = tpu.matmul %70, %13, %cst_29 {dimension_numbers = #tpu.dot_dimension_numbers<[1], [0], [0], [1], [0, 0, 1, 1], [], []>} : vector<8x128xbf16>, vector<128x128xbf16>, vector<8x128xf32> -> vector<8x128xf32>
    %72 = vector.extract_strided_slice %11 {offsets = [24, 0], sizes = [8, 128], strides = [1, 1]} : vector<64x128xf32> to vector<8x128xf32>
    %73 = arith.addf %72, %71 : vector<8x128xf32>
    %74 = math.tanh %73 : vector<8x128xf32>
    %75 = arith.truncf %74 : vector<8x128xf32> to vector<8x128xbf16>
    %cst_30 = arith.constant dense<0.000000e+00> : vector<8x128xf32>
    %76 = tpu.matmul %75, %13, %cst_30 {dimension_numbers = #tpu.dot_dimension_numbers<[1], [0], [0], [1], [0, 0, 1, 1], [], []>} : vector<8x128xbf16>, vector<128x128xbf16>, vector<8x128xf32> -> vector<8x128xf32>
    %77 = vector.extract_strided_slice %11 {offsets = [32, 0], sizes = [8, 128], strides = [1, 1]} : vector<64x128xf32> to vector<8x128xf32>
    %78 = arith.addf %77, %76 : vector<8x128xf32>
    %79 = math.tanh %78 : vector<8x128xf32>
    %80 = arith.truncf %79 : vector<8x128xf32> to vector<8x128xbf16>
    %cst_31 = arith.constant dense<0.000000e+00> : vector<8x128xf32>
    %81 = tpu.matmul %80, %13, %cst_31 {dimension_numbers = #tpu.dot_dimension_numbers<[1], [0], [0], [1], [0, 0, 1, 1], [], []>} : vector<8x128xbf16>, vector<128x128xbf16>, vector<8x128xf32> -> vector<8x128xf32>
    %82 = vector.extract_strided_slice %11 {offsets = [40, 0], sizes = [8, 128], strides = [1, 1]} : vector<64x128xf32> to vector<8x128xf32>
    %83 = arith.addf %82, %81 : vector<8x128xf32>
    %84 = math.tanh %83 : vector<8x128xf32>
    %85 = arith.truncf %84 : vector<8x128xf32> to vector<8x128xbf16>
    %cst_32 = arith.constant dense<0.000000e+00> : vector<8x128xf32>
    %86 = tpu.matmul %85, %13, %cst_32 {dimension_numbers = #tpu.dot_dimension_numbers<[1], [0], [0], [1], [0, 0, 1, 1], [], []>} : vector<8x128xbf16>, vector<128x128xbf16>, vector<8x128xf32> -> vector<8x128xf32>
    %87 = vector.extract_strided_slice %11 {offsets = [48, 0], sizes = [8, 128], strides = [1, 1]} : vector<64x128xf32> to vector<8x128xf32>
    %88 = arith.addf %87, %86 : vector<8x128xf32>
    %89 = math.tanh %88 : vector<8x128xf32>
    %90 = arith.truncf %89 : vector<8x128xf32> to vector<8x128xbf16>
    %cst_33 = arith.constant dense<0.000000e+00> : vector<8x128xf32>
    %91 = tpu.matmul %90, %13, %cst_33 {dimension_numbers = #tpu.dot_dimension_numbers<[1], [0], [0], [1], [0, 0, 1, 1], [], []>} : vector<8x128xbf16>, vector<128x128xbf16>, vector<8x128xf32> -> vector<8x128xf32>
    %92 = vector.extract_strided_slice %11 {offsets = [56, 0], sizes = [8, 128], strides = [1, 1]} : vector<64x128xf32> to vector<8x128xf32>
    %93 = arith.addf %92, %91 : vector<8x128xf32>
    %94 = math.tanh %93 : vector<8x128xf32>
    %95 = tpu.concatenate %59, %64, %69, %74, %79, %84, %89, %94 in 0 : vector<8x128xf32>, vector<8x128xf32>, vector<8x128xf32>, vector<8x128xf32>, vector<8x128xf32>, vector<8x128xf32>, vector<8x128xf32>, vector<8x128xf32> -> vector<64x128xf32>
    %96 = arith.truncf %95 : vector<64x128xf32> to vector<64x128xbf16>
    %c0_34 = arith.constant 0 : index
    %c0_35 = arith.constant 0 : index
    %97 = vector.load %arg9[%c0_34, %c0_35] : memref<128x128xbf16, #tpu.memory_space<vmem>>, vector<128x128xbf16>
    %cst_36 = arith.constant dense<0.000000e+00> : vector<64x128xf32>
    %98 = tpu.matmul %96, %97, %cst_36 {dimension_numbers = #tpu.dot_dimension_numbers<[1], [0], [0], [1], [0, 0, 1, 1], [], []>} : vector<64x128xbf16>, vector<128x128xbf16>, vector<64x128xf32> -> vector<64x128xf32>
    %c0_37 = arith.constant 0 : index
    %c0_38 = arith.constant 0 : index
    %99 = vector.load %arg10[%c0_37, %c0_38] : memref<1x128xf32, #tpu.memory_space<vmem>>, vector<1x128xf32>
    %100 = vector.broadcast %99 : vector<1x128xf32> to vector<64x128xf32>
    %101 = arith.addf %98, %100 : vector<64x128xf32>
    %c0_39 = arith.constant 0 : index
    %c0_40 = arith.constant 0 : index
    %102 = vector.load %arg11[%c0_39, %c0_40] : memref<64x128xf32, #tpu.memory_space<vmem>>, vector<64x128xf32>
    tpu.vector_store %arg11[%c0_39, %c0_40], %101 {strides = array<i32>} : memref<64x128xf32, #tpu.memory_space<vmem>>, vector<64x128xf32>,
    return
  }
}

</mosaic_0001>

<llo_original>
// kernel: tpu_custom_call.1
$region0: #{tpu_custom_call.1}
  #allocation0 [shape = 'u32[]', space=smem, size = 0x4, offset = 0x4, fixed_abs, tag = 'smem constant byte address 0x4 - core index']
  #allocation1 [shape = 'u32[144,128]{1,0:T(1,128)}', space=vmem, size = 0x12000, scoped, tag = 'internal scratch']
  %s0 = inlined_call_operand.hbm [shape: bf16[64,128], index: 0, kind: input, shape index: {}]
  %s1 = inlined_call_operand.hbm [shape: f32[8,128], index: 1, kind: input, shape index: {}]
  %s2 = inlined_call_operand.hbm [shape: bf16[64,128], index: 2, kind: input, shape index: {}]
  %s3 = inlined_call_operand.hbm [shape: bf16[128,128], index: 3, kind: input, shape index: {}]
  %s4 = inlined_call_operand.hbm [shape: bf16[128,128], index: 4, kind: input, shape index: {}]
  %s5 = inlined_call_operand.vmem [shape: f32[1,128], index: 5, kind: input, shape index: {}]
  %s6 = inlined_call_operand.hbm [shape: bf16[128,128], index: 6, kind: input, shape index: {}]
  %s7 = inlined_call_operand.hbm [shape: bf16[128,128], index: 7, kind: input, shape index: {}]
  %s8 = inlined_call_operand.vmem [shape: f32[1,128], index: 8, kind: input, shape index: {}]
  %s9 = inlined_call_operand.hbm [shape: bf16[128,128], index: 9, kind: input, shape index: {}]
  %s10 = inlined_call_operand.vmem [shape: f32[1,128], index: 10, kind: input, shape index: {}]
  %s11 = inlined_call_operand.hbm [shape: f32[64,128], index: 11, kind: output, shape index: {}]
  %s12 = sld [smem:[#allocation0]]
  $region86: #{tpu_custom_call.1} parent=0
    _
  %s14 = ssub.s32 1, %s12
  %s15 = scalar_select 0, %s14, %s12
  $region1: #{tpu_custom_call.1} parent=0
    #allocation2 [shape = 'u8[16384]{0}', space=vmem, size = 0x4000, scoped, tag = 'input window, operand 0, single buffered']
    #allocation3 [shape = 's32[1]{0}', space=sflag, size = 0x4, scoped, tag = 'scoped memory for tpu_custom_call.1']
    #allocation4 [shape = 's32[1]{0}', space=sflag, size = 0x4, scoped, tag = 'scoped memory for tpu_custom_call.1']
    #allocation5 [shape = 'u8[4096]{0}', space=vmem, size = 0x1000, scoped, tag = 'input window, operand 1, single buffered']
    #allocation6 [shape = 's32[1]{0}', space=sflag, size = 0x4, scoped, tag = 'scoped memory for tpu_custom_call.1']
    #allocation7 [shape = 'u8[16384]{0}', space=vmem, size = 0x4000, scoped, tag = 'input window, operand 2, single buffered']
    #allocation8 [shape = 'u8[32768]{0}', space=vmem, size = 0x8000, scoped, tag = 'input window, operand 3, single buffered']
    #allocation9 [shape = 's32[1]{0}', space=sflag, size = 0x4, scoped, tag = 'scoped memory for tpu_custom_call.1']
    #allocation10 [shape = 'u8[32768]{0}', space=vmem, size = 0x8000, scoped, tag = 'input window, operand 4, single buffered']
    #allocation11 [shape = 'u8[32768]{0}', space=vmem, size = 0x8000, scoped, tag = 'input window, operand 6, single buffered']
    #allocation12 [shape = 's32[1]{0}', space=sflag, size = 0x4, scoped, tag = 'scoped memory for tpu_custom_call.1']
    #allocation13 [shape = 'u8[32768]{0}', space=vmem, size = 0x8000, scoped, tag = 'input window, operand 7, single buffered']
    #allocation14 [shape = 'u8[32768]{0}', space=vmem, size = 0x8000, scoped, tag = 'input window, operand 9, single buffered']
    #allocation15 [shape = 's32[1]{0}', space=sflag, size = 0x4, scoped, tag = 'scoped memory for tpu_custom_call.1']
    #allocation16 [shape = 'u8[32768]{0}', space=vmem, size = 0x8000, scoped, tag = 'output window, operand 0, single buffered']
    %16 = vsyncpa [#allocation3], 0
    %17 = vsyncpa [#allocation6], 0
    %18 = vsyncpa [#allocation9], 0
    %19 = vsyncpa [#allocation12], 0
    %20 = vsyncpa [#allocation15], 0
    %21 = vsyncpa [#allocation4], 0
    // Predicated region
    $region2: #{tpu_custom_call.1} parent=1 // pred_check
      _
    $region3: #{tpu_custom_call.1} parent=1 // pred_check_branch
      %23 = sbr.rel (0) target = $region5
    $region4: #{tpu_custom_call.1} parent=1 // pred_region
      %s25 = ssub.s32 512, 512
      %26 = vsyncadd [#allocation3], %s25
      %s27 = sshll.u32 [#allocation2], 4
      %s28 = int_to_ptr.vmem [resolvable:$true] %s27
      %33 = dma.hbm_to_vmem [thread:$0]  %s0, 512, %s28, [#allocation3], 64, 64, 4
    $region5: #{tpu_custom_call.1} parent=1 // pred_fallthru
      _
    // Predicated region
    $region6: #{tpu_custom_call.1} parent=1 // pred_check
      _
    $region7: #{tpu_custom_call.1} parent=1 // pred_check_branch
      %35 = sbr.rel (0) target = $region9
    $region8: #{tpu_custom_call.1} parent=1 // pred_region
      %s37 = ssub.s32 128, 128
      %38 = vsyncadd [#allocation6], %s37
      %s40 = sshll.u32 [#allocation5], 4
      %s41 = int_to_ptr.vmem [resolvable:$true] %s40
      %43 = dma.hbm_to_vmem [thread:$0]  %s1, 128, %s41, [#allocation6]
    $region9: #{tpu_custom_call.1} parent=1 // pred_fallthru
      _
    // Predicated region
    $region10: #{tpu_custom_call.1} parent=1 // pred_check
      _
    $region11: #{tpu_custom_call.1} parent=1 // pred_check_branch
      %45 = sbr.rel (0) target = $region13
    $region12: #{tpu_custom_call.1} parent=1 // pred_region
      %s47 = ssub.s32 512, 512
      %48 = vsyncadd [#allocation6], %s47
      %s49 = sshll.u32 [#allocation7], 4
      %s50 = int_to_ptr.vmem [resolvable:$true] %s49
      %55 = dma.hbm_to_vmem [thread:$0]  %s2, 512, %s50, [#allocation6], 64, 64, 4
    $region13: #{tpu_custom_call.1} parent=1 // pred_fallthru
      _
    // Predicated region
    $region14: #{tpu_custom_call.1} parent=1 // pred_check
      _
    $region15: #{tpu_custom_call.1} parent=1 // pred_check_branch
      %57 = sbr.rel (0) target = $region17
    $region16: #{tpu_custom_call.1} parent=1 // pred_region
      %s59 = ssub.s32 1024, 1024
      %60 = vsyncadd [#allocation9], %s59
      %s61 = sshll.u32 [#allocation8], 4
      %s62 = int_to_ptr.vmem [resolvable:$true] %s61
      %67 = dma.hbm_to_vmem [thread:$0]  %s3, 1024, %s62, [#allocation9], 64, 64, 4
    $region17: #{tpu_custom_call.1} parent=1 // pred_fallthru
      _
    // Predicated region
    $region18: #{tpu_custom_call.1} parent=1 // pred_check
      _
    $region19: #{tpu_custom_call.1} parent=1 // pred_check_branch
      %69 = sbr.rel (0) target = $region21
    $region20: #{tpu_custom_call.1} parent=1 // pred_region
      %s71 = ssub.s32 1024, 1024
      %72 = vsyncadd [#allocation9], %s71
      %s73 = sshll.u32 [#allocation10], 4
      %s74 = int_to_ptr.vmem [resolvable:$true] %s73
      %79 = dma.hbm_to_vmem [thread:$0]  %s4, 1024, %s74, [#allocation9], 64, 64, 4
    $region21: #{tpu_custom_call.1} parent=1 // pred_fallthru
      _
    // Predicated region
    $region22: #{tpu_custom_call.1} parent=1 // pred_check
      _
    $region23: #{tpu_custom_call.1} parent=1 // pred_check_branch
      %81 = sbr.rel (0) target = $region25
    $region24: #{tpu_custom_call.1} parent=1 // pred_region
      _
    $region25: #{tpu_custom_call.1} parent=1 // pred_fallthru
      _
    // Predicated region
    $region26: #{tpu_custom_call.1} parent=1 // pred_check
      _
    $region27: #{tpu_custom_call.1} parent=1 // pred_check_branch
      %83 = sbr.rel (0) target = $region29
    $region28: #{tpu_custom_call.1} parent=1 // pred_region
      %s85 = ssub.s32 1024, 1024
      %86 = vsyncadd [#allocation12], %s85
      %s87 = sshll.u32 [#allocation11], 4
      %s88 = int_to_ptr.vmem [resolvable:$true] %s87
      %93 = dma.hbm_to_vmem [thread:$0]  %s6, 1024, %s88, [#allocation12], 64, 64, 4
    $region29: #{tpu_custom_call.1} parent=1 // pred_fallthru
      _
    // Predicated region
    $region30: #{tpu_custom_call.1} parent=1 // pred_check
      _
    $region31: #{tpu_custom_call.1} parent=1 // pred_check_branch
      %95 = sbr.rel (0) target = $region33
    $region32: #{tpu_custom_call.1} parent=1 // pred_region
      %s97 = ssub.s32 1024, 1024
      %98 = vsyncadd [#allocation12], %s97
      %s99 = sshll.u32 [#allocation13], 4
      %s100 = int_to_ptr.vmem [resolvable:$true] %s99
      %105 = dma.hbm_to_vmem [thread:$0]  %s7, 1024, %s100, [#allocation12], 64, 64, 4
    $region33: #{tpu_custom_call.1} parent=1 // pred_fallthru
      _
    // Predicated region
    $region34: #{tpu_custom_call.1} parent=1 // pred_check
      _
    $region35: #{tpu_custom_call.1} parent=1 // pred_check_branch
      %107 = sbr.rel (0) target = $region37
    $region36: #{tpu_custom_call.1} parent=1 // pred_region
      _
    $region37: #{tpu_custom_call.1} parent=1 // pred_fallthru
      _
    // Predicated region
    $region38: #{tpu_custom_call.1} parent=1 // pred_check
      _
    $region39: #{tpu_custom_call.1} parent=1 // pred_check_branch
      %109 = sbr.rel (0) target = $region41
    $region40: #{tpu_custom_call.1} parent=1 // pred_region
      %s111 = ssub.s32 1024, 1024
      %112 = vsyncadd [#allocation15], %s111
      %s113 = sshll.u32 [#allocation14], 4
      %s114 = int_to_ptr.vmem [resolvable:$true] %s113
      %119 = dma.hbm_to_vmem [thread:$0]  %s9, 1024, %s114, [#allocation15], 64, 64, 4
    $region41: #{tpu_custom_call.1} parent=1 // pred_fallthru
      _
    // Predicated region
    $region42: #{tpu_custom_call.1} parent=1 // pred_check
      _
    $region43: #{tpu_custom_call.1} parent=1 // pred_check_branch
      %121 = sbr.rel (0) target = $region45
    $region44: #{tpu_custom_call.1} parent=1 // pred_region
      _
    $region45: #{tpu_custom_call.1} parent=1 // pred_fallthru
      _
    // Predicated region
    $region46: #{tpu_custom_call.1} parent=1 // pred_check
      _
    $region47: #{tpu_custom_call.1} parent=1 // pred_check_branch
      %123 = sbr.rel (0) target = $region49
    $region48: #{tpu_custom_call.1} parent=1 // pred_region
      %124 = dma.done [#allocation3], 512
    $region49: #{tpu_custom_call.1} parent=1 // pred_fallthru
      _
    // Predicated region
    $region50: #{tpu_custom_call.1} parent=1 // pred_check
      _
    $region51: #{tpu_custom_call.1} parent=1 // pred_check_branch
      %126 = sbr.rel (0) target = $region53
    $region52: #{tpu_custom_call.1} parent=1 // pred_region
      %127 = dma.done [#allocation6], 128
    $region53: #{tpu_custom_call.1} parent=1 // pred_fallthru
      _
    // Predicated region
    $region54: #{tpu_custom_call.1} parent=1 // pred_check
      _
    $region55: #{tpu_custom_call.1} parent=1 // pred_check_branch
      %129 = sbr.rel (0) target = $region57
    $region56: #{tpu_custom_call.1} parent=1 // pred_region
      %130 = dma.done [#allocation6], 512
    $region57: #{tpu_custom_call.1} parent=1 // pred_fallthru
      _
    // Predicated region
    $region58: #{tpu_custom_call.1} parent=1 // pred_check
      _
    $region59: #{tpu_custom_call.1} parent=1 // pred_check_branch
      %132 = sbr.rel (0) target = $region61
    $region60: #{tpu_custom_call.1} parent=1 // pred_region
      %133 = dma.done [#allocation9], 1024
    $region61: #{tpu_custom_call.1} parent=1 // pred_fallthru
      _
    // Predicated region
    $region62: #{tpu_custom_call.1} parent=1 // pred_check
      _
    $region63: #{tpu_custom_call.1} parent=1 // pred_check_branch
      %135 = sbr.rel (0) target = $region65
    $region64: #{tpu_custom_call.1} parent=1 // pred_region
      %136 = dma.done [#allocation9], 1024
    $region65: #{tpu_custom_call.1} parent=1 // pred_fallthru
      _
    // Predicated region
    $region66: #{tpu_custom_call.1} parent=1 // pred_check
      _
    $region67: #{tpu_custom_call.1} parent=1 // pred_check_branch
      %138 = sbr.rel (0) target = $region69
    $region68: #{tpu_custom_call.1} parent=1 // pred_region
      %139 = dma.done [#allocation12], 1024
    $region69: #{tpu_custom_call.1} parent=1 // pred_fallthru
      _
    // Predicated region
    $region70: #{tpu_custom_call.1} parent=1 // pred_check
      _
    $region71: #{tpu_custom_call.1} parent=1 // pred_check_branch
      %141 = sbr.rel (0) target = $region73
    $region72: #{tpu_custom_call.1} parent=1 // pred_region
      %142 = dma.done [#allocation12], 1024
    $region73: #{tpu_custom_call.1} parent=1 // pred_fallthru
      _
    // Predicated region
    $region74: #{tpu_custom_call.1} parent=1 // pred_check
      _
    $region75: #{tpu_custom_call.1} parent=1 // pred_check_branch
      %144 = sbr.rel (0) target = $region77
    $region76: #{tpu_custom_call.1} parent=1 // pred_region
      %145 = dma.done [#allocation15], 1024
    $region77: #{tpu_custom_call.1} parent=1 // pred_fallthru
      _
    %v147 = vld [vmem:[#allocation2] sm:$0xf]
    %v148 = vld [vmem:[#allocation2 + $0x4] sm:$0xf]
    %v149 = vld [vmem:[#allocation2 + $0x8] sm:$0xf]
    %v150 = vld [vmem:[#allocation2 + $0xc] sm:$0xf]
    %v151 = vld [vmem:[#allocation2 + $0x10] sm:$0xf]
    %v152 = vld [vmem:[#allocation2 + $0x14] sm:$0xf]
    %v153 = vld [vmem:[#allocation2 + $0x18] sm:$0xf]
    %v154 = vld [vmem:[#allocation2 + $0x1c] sm:$0xf]
    %v155 = vld [vmem:[#allocation8] sm:$0xf]
    %v156 = vld [vmem:[#allocation8 + $0x4] sm:$0xf]
    %v157 = vld [vmem:[#allocation8 + $0x8] sm:$0xf]
    %v158 = vld [vmem:[#allocation8 + $0xc] sm:$0xf]
    %v159 = vld [vmem:[#allocation8 + $0x10] sm:$0xf]
    %v160 = vld [vmem:[#allocation8 + $0x14] sm:$0xf]
    %v161 = vld [vmem:[#allocation8 + $0x18] sm:$0xf]
    %v162 = vld [vmem:[#allocation8 + $0x1c] sm:$0xf]
    %v163 = vld [vmem:[#allocation8 + $0x20] sm:$0xf]
    %v164 = vld [vmem:[#allocation8 + $0x24] sm:$0xf]
    %v165 = vld [vmem:[#allocation8 + $0x28] sm:$0xf]
    %v166 = vld [vmem:[#allocation8 + $0x2c] sm:$0xf]
    %v167 = vld [vmem:[#allocation8 + $0x30] sm:$0xf]
    %v168 = vld [vmem:[#allocation8 + $0x34] sm:$0xf]
    %v169 = vld [vmem:[#allocation8 + $0x38] sm:$0xf]
    %v170 = vld [vmem:[#allocation8 + $0x3c] sm:$0xf]
    %v171 = vld [vmem:[%s5] sm:$0x1]
    %v173 = vlaneseq
    %v174 = vshrl.u32 %v173, 7
    %v175 = vsub.s32 0, %v174
    %v176 = vrot.slane %v171, %v175
    %v186 = vunpack.c.l.b16 %v147
    %v187 = vunpack.c.l.b16 %v148
    %v188 = vunpack.c.l.b16 %v149
    %v189 = vunpack.c.l.b16 %v150
    %v190 = vunpack.c.l.b16 %v151
    %v191 = vunpack.c.l.b16 %v152
    %v192 = vunpack.c.l.b16 %v153
    %v193 = vunpack.c.l.b16 %v154
    %v194 = vpack.c.b16 %v187, %v186
    %v195 = vpack.c.b16 %v189, %v188
    %v196 = vpack.c.b16 %v191, %v190
    %v197 = vpack.c.b16 %v193, %v192
    %v218 = vunpack.c.l.b16 %v155
    %v219 = vunpack.c.l.b16 %v156
    %v220 = vunpack.c.l.b16 %v157
    %v221 = vunpack.c.l.b16 %v158
    %v222 = vunpack.c.l.b16 %v159
    %v223 = vunpack.c.l.b16 %v160
    %v224 = vunpack.c.l.b16 %v161
    %v225 = vunpack.c.l.b16 %v162
    %v226 = vunpack.c.l.b16 %v163
    %v227 = vunpack.c.l.b16 %v164
    %v228 = vunpack.c.l.b16 %v165
    %v229 = vunpack.c.l.b16 %v166
    %v230 = vunpack.c.l.b16 %v167
    %v231 = vunpack.c.l.b16 %v168
    %v232 = vunpack.c.l.b16 %v169
    %v233 = vunpack.c.l.b16 %v170
    %v234 = vpack.c.b16 %v219, %v218
    %v235 = vpack.c.b16 %v221, %v220
    %v236 = vpack.c.b16 %v223, %v222
    %v237 = vpack.c.b16 %v225, %v224
    %v238 = vpack.c.b16 %v227, %v226
    %v239 = vpack.c.b16 %v229, %v228
    %v240 = vpack.c.b16 %v231, %v230
    %v241 = vpack.c.b16 %v233, %v232
    %250 = vmatprep.subr.bf16.mxu0 0
    %251 = vmatpush1.bf16.msra.mxu0 %v234
    %252 = vmatprep.subr.bf16.mxu0 0
    %253 = vmatpush1.bf16.msra.mxu0 %v235
    %254 = vmatprep.subr.bf16.mxu0 0
    %255 = vmatpush1.bf16.msra.mxu0 %v236
    %256 = vmatprep.subr.bf16.mxu0 0
    %257 = vmatpush1.bf16.msra.mxu0 %v237
    %258 = vmatprep.subr.bf16.mxu0 0
    %259 = vmatpush1.bf16.msra.mxu0 %v238
    %260 = vmatprep.subr.bf16.mxu0 0
    %261 = vmatpush1.bf16.msra.mxu0 %v239
    %262 = vmatprep.subr.bf16.mxu0 0
    %263 = vmatpush1.bf16.msra.mxu0 %v240
    %264 = vmatprep.subr.bf16.mxu0 0
    %265 = vmatpush1.bf16.msra.mxu0 %v241
    %266 = vmatprep.subr.bf16.mxu0 0
    %267 = vmatpush1.bf16.msra.mxu0 0
    %268 = vmatprep.subr.bf16.mxu0 0
    %269 = vmatpush1.bf16.msra.mxu0 0
    %270 = vmatprep.subr.bf16.mxu0 0
    %271 = vmatpush1.bf16.msra.mxu0 0
    %272 = vmatprep.subr.bf16.mxu0 0
    %273 = vmatpush1.bf16.msra.mxu0 0
    %274 = vmatprep.subr.bf16.mxu0 0
    %275 = vmatpush1.bf16.msra.mxu0 0
    %276 = vmatprep.subr.bf16.mxu0 0
    %277 = vmatpush1.bf16.msra.mxu0 0
    %278 = vmatprep.subr.bf16.mxu0 0
    %279 = vmatpush1.bf16.msra.mxu0 0
    %280 = vmatprep.subr.bf16.mxu0 0
    %281 = vmatpush1.bf16.msra.mxu0 0
    %282 = vmatprep.mubr.bf16.mxu0 0
    %283 = vmatmul.mubr.bf16.gmra.mrb[0].mxu0 %v194
    %v284 = vpop.f32.mrb[0].mxu0
    %v285 = vadd.f32 %v176, %v284
    %v286 = vpop.f32.mrb[0].mxu0
    %v287 = vpop.f32.mrb[0].mxu0
    %v288 = vadd.f32 %v176, %v287
    %v289 = vpop.f32.mrb[0].mxu0
    %290 = vmatprep.mubr.bf16.mxu0 0
    %291 = vmatmul.mubr.bf16.gmra.mrb[0].mxu0 %v195
    %v292 = vpop.f32.mrb[0].mxu0
    %v293 = vadd.f32 %v176, %v292
    %v294 = vpop.f32.mrb[0].mxu0
    %v295 = vpop.f32.mrb[0].mxu0
    %v296 = vadd.f32 %v176, %v295
    %v297 = vpop.f32.mrb[0].mxu0
    %298 = vmatprep.mubr.bf16.mxu0 0
    %299 = vmatmul.mubr.bf16.gmra.mrb[0].mxu0 %v196
    %v300 = vpop.f32.mrb[0].mxu0
    %v301 = vadd.f32 %v176, %v300
    %v302 = vpop.f32.mrb[0].mxu0
    %v303 = vpop.f32.mrb[0].mxu0
    %v304 = vadd.f32 %v176, %v303
    %v305 = vpop.f32.mrb[0].mxu0
    %306 = vmatprep.mubr.bf16.mxu0 0
    %307 = vmatmul.mubr.bf16.gmra.mrb[0].mxu0 %v197
    %v308 = vpop.f32.mrb[0].mxu0
    %v309 = vadd.f32 %v176, %v308
    %v310 = vpop.f32.mrb[0].mxu0
    %v311 = vpop.f32.mrb[0].mxu0
    %v312 = vadd.f32 %v176, %v311
    %v313 = vpop.f32.mrb[0].mxu0
    %314 = vdwg.mxu0
    %v315 = vld [vmem:[#allocation7] sm:$0xf]
    %v316 = vld [vmem:[#allocation7 + $0x4] sm:$0xf]
    %v317 = vld [vmem:[#allocation7 + $0x8] sm:$0xf]
    %v318 = vld [vmem:[#allocation7 + $0xc] sm:$0xf]
    %v319 = vld [vmem:[#allocation7 + $0x10] sm:$0xf]
    %v320 = vld [vmem:[#allocation7 + $0x14] sm:$0xf]
    %v321 = vld [vmem:[#allocation7 + $0x18] sm:$0xf]
    %v322 = vld [vmem:[#allocation7 + $0x1c] sm:$0xf]
    %v323 = vld [vmem:[#allocation11] sm:$0xf]
    %v324 = vld [vmem:[#allocation11 + $0x4] sm:$0xf]
    %v325 = vld [vmem:[#allocation11 + $0x8] sm:$0xf]
    %v326 = vld [vmem:[#allocation11 + $0xc] sm:$0xf]
    %v327 = vld [vmem:[#allocation11 + $0x10] sm:$0xf]
    %v328 = vld [vmem:[#allocation11 + $0x14] sm:$0xf]
    %v329 = vld [vmem:[#allocation11 + $0x18] sm:$0xf]
    %v330 = vld [vmem:[#allocation11 + $0x1c] sm:$0xf]
    %v331 = vld [vmem:[#allocation11 + $0x20] sm:$0xf]
    %v332 = vld [vmem:[#allocation11 + $0x24] sm:$0xf]
    %v333 = vld [vmem:[#allocation11 + $0x28] sm:$0xf]
    %v334 = vld [vmem:[#allocation11 + $0x2c] sm:$0xf]
    %v335 = vld [vmem:[#allocation11 + $0x30] sm:$0xf]
    %v336 = vld [vmem:[#allocation11 + $0x34] sm:$0xf]
    %v337 = vld [vmem:[#allocation11 + $0x38] sm:$0xf]
    %v338 = vld [vmem:[#allocation11 + $0x3c] sm:$0xf]
    %v339 = vld [vmem:[%s8] sm:$0x1]
    %v341 = vlaneseq
    %v342 = vshrl.u32 %v341, 7
    %v343 = vsub.s32 0, %v342
    %v344 = vrot.slane %v339, %v343
    %v354 = vunpack.c.l.b16 %v315
    %v355 = vunpack.c.l.b16 %v316
    %v356 = vunpack.c.l.b16 %v317
    %v357 = vunpack.c.l.b16 %v318
    %v358 = vunpack.c.l.b16 %v319
    %v359 = vunpack.c.l.b16 %v320
    %v360 = vunpack.c.l.b16 %v321
    %v361 = vunpack.c.l.b16 %v322
    %v362 = vpack.c.b16 %v355, %v354
    %v363 = vpack.c.b16 %v357, %v356
    %v364 = vpack.c.b16 %v359, %v358
    %v365 = vpack.c.b16 %v361, %v360
    %v386 = vunpack.c.l.b16 %v323
    %v387 = vunpack.c.l.b16 %v324
    %v388 = vunpack.c.l.b16 %v325
    %v389 = vunpack.c.l.b16 %v326
    %v390 = vunpack.c.l.b16 %v327
    %v391 = vunpack.c.l.b16 %v328
    %v392 = vunpack.c.l.b16 %v329
    %v393 = vunpack.c.l.b16 %v330
    %v394 = vunpack.c.l.b16 %v331
    %v395 = vunpack.c.l.b16 %v332
    %v396 = vunpack.c.l.b16 %v333
    %v397 = vunpack.c.l.b16 %v334
    %v398 = vunpack.c.l.b16 %v335
    %v399 = vunpack.c.l.b16 %v336
    %v400 = vunpack.c.l.b16 %v337
    %v401 = vunpack.c.l.b16 %v338
    %v402 = vpack.c.b16 %v387, %v386
    %v403 = vpack.c.b16 %v389, %v388
    %v404 = vpack.c.b16 %v391, %v390
    %v405 = vpack.c.b16 %v393, %v392
    %v406 = vpack.c.b16 %v395, %v394
    %v407 = vpack.c.b16 %v397, %v396
    %v408 = vpack.c.b16 %v399, %v398
    %v409 = vpack.c.b16 %v401, %v400
    %418 = vmatprep.subr.bf16.mxu0 0
    %419 = vmatpush1.bf16.msra.mxu0 %v402
    %420 = vmatprep.subr.bf16.mxu0 0
    %421 = vmatpush1.bf16.msra.mxu0 %v403
    %422 = vmatprep.subr.bf16.mxu0 0
    %423 = vmatpush1.bf16.msra.mxu0 %v404
    %424 = vmatprep.subr.bf16.mxu0 0
    %425 = vmatpush1.bf16.msra.mxu0 %v405
    %426 = vmatprep.subr.bf16.mxu0 0
    %427 = vmatpush1.bf16.msra.mxu0 %v406
    %428 = vmatprep.subr.bf16.mxu0 0
    %429 = vmatpush1.bf16.msra.mxu0 %v407
    %430 = vmatprep.subr.bf16.mxu0 0
    %431 = vmatpush1.bf16.msra.mxu0 %v408
    %432 = vmatprep.subr.bf16.mxu0 0
    %433 = vmatpush1.bf16.msra.mxu0 %v409
    %434 = vmatprep.subr.bf16.mxu0 0
    %435 = vmatpush1.bf16.msra.mxu0 0
    %436 = vmatprep.subr.bf16.mxu0 0
    %437 = vmatpush1.bf16.msra.mxu0 0
    %438 = vmatprep.subr.bf16.mxu0 0
    %439 = vmatpush1.bf16.msra.mxu0 0
    %440 = vmatprep.subr.bf16.mxu0 0
    %441 = vmatpush1.bf16.msra.mxu0 0
    %442 = vmatprep.subr.bf16.mxu0 0
    %443 = vmatpush1.bf16.msra.mxu0 0
    %444 = vmatprep.subr.bf16.mxu0 0
    %445 = vmatpush1.bf16.msra.mxu0 0
    %446 = vmatprep.subr.bf16.mxu0 0
    %447 = vmatpush1.bf16.msra.mxu0 0
    %448 = vmatprep.subr.bf16.mxu0 0
    %449 = vmatpush1.bf16.msra.mxu0 0
    %450 = vmatprep.mubr.bf16.mxu0 0
    %451 = vmatmul.mubr.bf16.gmra.mrb[0].mxu0 %v362
    %v452 = vpop.f32.mrb[0].mxu0
    %v453 = vadd.f32 %v344, %v452
    %v454 = vpop.f32.mrb[0].mxu0
    %v455 = vpop.f32.mrb[0].mxu0
    %v456 = vadd.f32 %v344, %v455
    %v457 = vpop.f32.mrb[0].mxu0
    %458 = vmatprep.mubr.bf16.mxu0 0
    %459 = vmatmul.mubr.bf16.gmra.mrb[0].mxu0 %v363
    %v460 = vpop.f32.mrb[0].mxu0
    %v461 = vadd.f32 %v344, %v460
    %v462 = vpop.f32.mrb[0].mxu0
    %v463 = vpop.f32.mrb[0].mxu0
    %v464 = vadd.f32 %v344, %v463
    %v465 = vpop.f32.mrb[0].mxu0
    %466 = vmatprep.mubr.bf16.mxu0 0
    %467 = vmatmul.mubr.bf16.gmra.mrb[0].mxu0 %v364
    %v468 = vpop.f32.mrb[0].mxu0
    %v469 = vadd.f32 %v344, %v468
    %v470 = vpop.f32.mrb[0].mxu0
    %v471 = vpop.f32.mrb[0].mxu0
    %v472 = vadd.f32 %v344, %v471
    %v473 = vpop.f32.mrb[0].mxu0
    %474 = vmatprep.mubr.bf16.mxu0 0
    %475 = vmatmul.mubr.bf16.gmra.mrb[0].mxu0 %v365
    %v476 = vpop.f32.mrb[0].mxu0
    %v477 = vadd.f32 %v344, %v476
    %v478 = vpop.f32.mrb[0].mxu0
    %v479 = vpop.f32.mrb[0].mxu0
    %v480 = vadd.f32 %v344, %v479
    %v481 = vpop.f32.mrb[0].mxu0
    %482 = vdwg.mxu0
    %v483 = vld [vmem:[#allocation10] sm:$0xf]
    %v484 = vld [vmem:[#allocation10 + $0x4] sm:$0xf]
    %v485 = vld [vmem:[#allocation10 + $0x8] sm:$0xf]
    %v486 = vld [vmem:[#allocation10 + $0xc] sm:$0xf]
    %v487 = vld [vmem:[#allocation10 + $0x10] sm:$0xf]
    %v488 = vld [vmem:[#allocation10 + $0x14] sm:$0xf]
    %v489 = vld [vmem:[#allocation10 + $0x18] sm:$0xf]
    %v490 = vld [vmem:[#allocation10 + $0x1c] sm:$0xf]
    %v491 = vld [vmem:[#allocation10 + $0x20] sm:$0xf]
    %v492 = vld [vmem:[#allocation10 + $0x24] sm:$0xf]
    %v493 = vld [vmem:[#allocation10 + $0x28] sm:$0xf]
    %v494 = vld [vmem:[#allocation10 + $0x2c] sm:$0xf]
    %v495 = vld [vmem:[#allocation10 + $0x30] sm:$0xf]
    %v496 = vld [vmem:[#allocation10 + $0x34] sm:$0xf]
    %v497 = vld [vmem:[#allocation10 + $0x38] sm:$0xf]
    %v498 = vld [vmem:[#allocation10 + $0x3c] sm:$0xf]
    %v499 = vld [vmem:[#allocation13] sm:$0xf]
    %v500 = vld [vmem:[#allocation13 + $0x4] sm:$0xf]
    %v501 = vld [vmem:[#allocation13 + $0x8] sm:$0xf]
    %v502 = vld [vmem:[#allocation13 + $0xc] sm:$0xf]
    %v503 = vld [vmem:[#allocation13 + $0x10] sm:$0xf]
    %v504 = vld [vmem:[#allocation13 + $0x14] sm:$0xf]
    %v505 = vld [vmem:[#allocation13 + $0x18] sm:$0xf]
    %v506 = vld [vmem:[#allocation13 + $0x1c] sm:$0xf]
    %v507 = vld [vmem:[#allocation13 + $0x20] sm:$0xf]
    %v508 = vld [vmem:[#allocation13 + $0x24] sm:$0xf]
    %v509 = vld [vmem:[#allocation13 + $0x28] sm:$0xf]
    %v510 = vld [vmem:[#allocation13 + $0x2c] sm:$0xf]
    %v511 = vld [vmem:[#allocation13 + $0x30] sm:$0xf]
    %v512 = vld [vmem:[#allocation13 + $0x34] sm:$0xf]
    %v513 = vld [vmem:[#allocation13 + $0x38] sm:$0xf]
    %v514 = vld [vmem:[#allocation13 + $0x3c] sm:$0xf]
    %v515 = vld [vmem:[#allocation5] sm:$0xff]
    %v516 = vpack.c.bf16 %v515, %v515
    %v533 = vunpack.c.l.b16 %v483
    %v534 = vunpack.c.l.b16 %v484
    %v535 = vunpack.c.l.b16 %v485
    %v536 = vunpack.c.l.b16 %v486
    %v537 = vunpack.c.l.b16 %v487
    %v538 = vunpack.c.l.b16 %v488
    %v539 = vunpack.c.l.b16 %v489
    %v540 = vunpack.c.l.b16 %v490
    %v541 = vunpack.c.l.b16 %v491
    %v542 = vunpack.c.l.b16 %v492
    %v543 = vunpack.c.l.b16 %v493
    %v544 = vunpack.c.l.b16 %v494
    %v545 = vunpack.c.l.b16 %v495
    %v546 = vunpack.c.l.b16 %v496
    %v547 = vunpack.c.l.b16 %v497
    %v548 = vunpack.c.l.b16 %v498
    %v549 = vpack.c.b16 %v534, %v533
    %v550 = vpack.c.b16 %v536, %v535
    %v551 = vpack.c.b16 %v538, %v537
    %v552 = vpack.c.b16 %v540, %v539
    %v553 = vpack.c.b16 %v542, %v541
    %v554 = vpack.c.b16 %v544, %v543
    %v555 = vpack.c.b16 %v546, %v545
    %v556 = vpack.c.b16 %v548, %v547
    %565 = vmatprep.subr.bf16.mxu0 0
    %566 = vmatpush1.bf16.msra.mxu0 %v549
    %567 = vmatprep.subr.bf16.mxu0 0
    %568 = vmatpush1.bf16.msra.mxu0 %v550
    %569 = vmatprep.subr.bf16.mxu0 0
    %570 = vmatpush1.bf16.msra.mxu0 %v551
    %571 = vmatprep.subr.bf16.mxu0 0
    %572 = vmatpush1.bf16.msra.mxu0 %v552
    %573 = vmatprep.subr.bf16.mxu0 0
    %574 = vmatpush1.bf16.msra.mxu0 %v553
    %575 = vmatprep.subr.bf16.mxu0 0
    %576 = vmatpush1.bf16.msra.mxu0 %v554
    %577 = vmatprep.subr.bf16.mxu0 0
    %578 = vmatpush1.bf16.msra.mxu0 %v555
    %579 = vmatprep.subr.bf16.mxu0 0
    %580 = vmatpush1.bf16.msra.mxu0 %v556
    %581 = vmatprep.subr.bf16.mxu0 0
    %582 = vmatpush1.bf16.msra.mxu0 0
    %583 = vmatprep.subr.bf16.mxu0 0
    %584 = vmatpush1.bf16.msra.mxu0 0
    %585 = vmatprep.subr.bf16.mxu0 0
    %586 = vmatpush1.bf16.msra.mxu0 0
    %587 = vmatprep.subr.bf16.mxu0 0
    %588 = vmatpush1.bf16.msra.mxu0 0
    %589 = vmatprep.subr.bf16.mxu0 0
    %590 = vmatpush1.bf16.msra.mxu0 0
    %591 = vmatprep.subr.bf16.mxu0 0
    %592 = vmatpush1.bf16.msra.mxu0 0
    %593 = vmatprep.subr.bf16.mxu0 0
    %594 = vmatpush1.bf16.msra.mxu0 0
    %595 = vmatprep.subr.bf16.mxu0 0
    %596 = vmatpush1.bf16.msra.mxu0 0
    %597 = vmatprep.mubr.bf16.mxu0 0
    %598 = vmatmul.mubr.bf16.gmra.mrb[0].mxu0 %v516
    %v599 = vpop.f32.mrb[0].mxu0
    %v600 = vadd.f32 0.0, %v599
    %v601 = vpop.f32.mrb[0].mxu0
    %v602 = vpop.f32.mrb[0].mxu0
    %v603 = vpop.f32.mrb[0].mxu0
    %604 = vdwg.mxu0
    %v605 = vadd.f32 %v285, %v600
    %v606 = vtanh.pop %v605
    %v607 = vpack.c.bf16 %v606, %v606
    %608 = vmatprep.subr.bf16.mxu0 0
    %609 = vmatpush1.bf16.msra.mxu0 %v549
    %610 = vmatprep.subr.bf16.mxu0 0
    %611 = vmatpush1.bf16.msra.mxu0 %v550
    %612 = vmatprep.subr.bf16.mxu0 0
    %613 = vmatpush1.bf16.msra.mxu0 %v551
    %614 = vmatprep.subr.bf16.mxu0 0
    %615 = vmatpush1.bf16.msra.mxu0 %v552
    %616 = vmatprep.subr.bf16.mxu0 0
    %617 = vmatpush1.bf16.msra.mxu0 %v553
    %618 = vmatprep.subr.bf16.mxu0 0
    %619 = vmatpush1.bf16.msra.mxu0 %v554
    %620 = vmatprep.subr.bf16.mxu0 0
    %621 = vmatpush1.bf16.msra.mxu0 %v555
    %622 = vmatprep.subr.bf16.mxu0 0
    %623 = vmatpush1.bf16.msra.mxu0 %v556
    %624 = vmatprep.subr.bf16.mxu0 0
    %625 = vmatpush1.bf16.msra.mxu0 0
    %626 = vmatprep.subr.bf16.mxu0 0
    %627 = vmatpush1.bf16.msra.mxu0 0
    %628 = vmatprep.subr.bf16.mxu0 0
    %629 = vmatpush1.bf16.msra.mxu0 0
    %630 = vmatprep.subr.bf16.mxu0 0
    %631 = vmatpush1.bf16.msra.mxu0 0
    %632 = vmatprep.subr.bf16.mxu0 0
    %633 = vmatpush1.bf16.msra.mxu0 0
    %634 = vmatprep.subr.bf16.mxu0 0
    %635 = vmatpush1.bf16.msra.mxu0 0
    %636 = vmatprep.subr.bf16.mxu0 0
    %637 = vmatpush1.bf16.msra.mxu0 0
    %638 = vmatprep.subr.bf16.mxu0 0
    %639 = vmatpush1.bf16.msra.mxu0 0
    %640 = vmatprep.mubr.bf16.mxu0 0
    %641 = vmatmul.mubr.bf16.gmra.mrb[0].mxu0 %v607
    %v642 = vpop.f32.mrb[0].mxu0
    %v643 = vadd.f32 0.0, %v642
    %v644 = vpop.f32.mrb[0].mxu0
    %v645 = vpop.f32.mrb[0].mxu0
    %v646 = vpop.f32.mrb[0].mxu0
    %647 = vdwg.mxu0
    %v648 = vadd.f32 %v288, %v643
    %v649 = vtanh.pop %v648
    %v650 = vpack.c.bf16 %v649, %v649
    %651 = vmatprep.subr.bf16.mxu0 0
    %652 = vmatpush1.bf16.msra.mxu0 %v549
    %653 = vmatprep.subr.bf16.mxu0 0
    %654 = vmatpush1.bf16.msra.mxu0 %v550
    %655 = vmatprep.subr.bf16.mxu0 0
    %656 = vmatpush1.bf16.msra.mxu0 %v551
    %657 = vmatprep.subr.bf16.mxu0 0
    %658 = vmatpush1.bf16.msra.mxu0 %v552
    %659 = vmatprep.subr.bf16.mxu0 0
    %660 = vmatpush1.bf16.msra.mxu0 %v553
    %661 = vmatprep.subr.bf16.mxu0 0
    %662 = vmatpush1.bf16.msra.mxu0 %v554
    %663 = vmatprep.subr.bf16.mxu0 0
    %664 = vmatpush1.bf16.msra.mxu0 %v555
    %665 = vmatprep.subr.bf16.mxu0 0
    %666 = vmatpush1.bf16.msra.mxu0 %v556
    %667 = vmatprep.subr.bf16.mxu0 0
    %668 = vmatpush1.bf16.msra.mxu0 0
    %669 = vmatprep.subr.bf16.mxu0 0
    %670 = vmatpush1.bf16.msra.mxu0 0
    %671 = vmatprep.subr.bf16.mxu0 0
    %672 = vmatpush1.bf16.msra.mxu0 0
    %673 = vmatprep.subr.bf16.mxu0 0
    %674 = vmatpush1.bf16.msra.mxu0 0
    %675 = vmatprep.subr.bf16.mxu0 0
    %676 = vmatpush1.bf16.msra.mxu0 0
    %677 = vmatprep.subr.bf16.mxu0 0
    %678 = vmatpush1.bf16.msra.mxu0 0
    %679 = vmatprep.subr.bf16.mxu0 0
    %680 = vmatpush1.bf16.msra.mxu0 0
    %681 = vmatprep.subr.bf16.mxu0 0
    %682 = vmatpush1.bf16.msra.mxu0 0
    %683 = vmatprep.mubr.bf16.mxu0 0
    %684 = vmatmul.mubr.bf16.gmra.mrb[0].mxu0 %v650
    %v685 = vpop.f32.mrb[0].mxu0
    %v686 = vadd.f32 0.0, %v685
    %v687 = vpop.f32.mrb[0].mxu0
    %v688 = vpop.f32.mrb[0].mxu0
    %v689 = vpop.f32.mrb[0].mxu0
    %690 = vdwg.mxu0
    %v691 = vadd.f32 %v293, %v686
    %v692 = vtanh.pop %v691
    %v693 = vpack.c.bf16 %v692, %v692
    %694 = vmatprep.subr.bf16.mxu0 0
    %695 = vmatpush1.bf16.msra.mxu0 %v549
    %696 = vmatprep.subr.bf16.mxu0 0
    %697 = vmatpush1.bf16.msra.mxu0 %v550
    %698 = vmatprep.subr.bf16.mxu0 0
    %699 = vmatpush1.bf16.msra.mxu0 %v551
    %700 = vmatprep.subr.bf16.mxu0 0
    %701 = vmatpush1.bf16.msra.mxu0 %v552
    %702 = vmatprep.subr.bf16.mxu0 0
    %703 = vmatpush1.bf16.msra.mxu0 %v553
    %704 = vmatprep.subr.bf16.mxu0 0
    %705 = vmatpush1.bf16.msra.mxu0 %v554
    %706 = vmatprep.subr.bf16.mxu0 0
    %707 = vmatpush1.bf16.msra.mxu0 %v555
    %708 = vmatprep.subr.bf16.mxu0 0
    %709 = vmatpush1.bf16.msra.mxu0 %v556
    %710 = vmatprep.subr.bf16.mxu0 0
    %711 = vmatpush1.bf16.msra.mxu0 0
    %712 = vmatprep.subr.bf16.mxu0 0
    %713 = vmatpush1.bf16.msra.mxu0 0
    %714 = vmatprep.subr.bf16.mxu0 0
    %715 = vmatpush1.bf16.msra.mxu0 0
    %716 = vmatprep.subr.bf16.mxu0 0
    %717 = vmatpush1.bf16.msra.mxu0 0
    %718 = vmatprep.subr.bf16.mxu0 0
    %719 = vmatpush1.bf16.msra.mxu0 0
    %720 = vmatprep.subr.bf16.mxu0 0
    %721 = vmatpush1.bf16.msra.mxu0 0
    %722 = vmatprep.subr.bf16.mxu0 0
    %723 = vmatpush1.bf16.msra.mxu0 0
    %724 = vmatprep.subr.bf16.mxu0 0
    %725 = vmatpush1.bf16.msra.mxu0 0
    %726 = vmatprep.mubr.bf16.mxu0 0
    %727 = vmatmul.mubr.bf16.gmra.mrb[0].mxu0 %v693
    %v728 = vpop.f32.mrb[0].mxu0
    %v729 = vadd.f32 0.0, %v728
    %v730 = vpop.f32.mrb[0].mxu0
    %v731 = vpop.f32.mrb[0].mxu0
    %v732 = vpop.f32.mrb[0].mxu0
    %733 = vdwg.mxu0
    %v734 = vadd.f32 %v296, %v729
    %v735 = vtanh.pop %v734
    %v736 = vpack.c.bf16 %v735, %v735
    %737 = vmatprep.subr.bf16.mxu0 0
    %738 = vmatpush1.bf16.msra.mxu0 %v549
    %739 = vmatprep.subr.bf16.mxu0 0
    %740 = vmatpush1.bf16.msra.mxu0 %v550
    %741 = vmatprep.subr.bf16.mxu0 0
    %742 = vmatpush1.bf16.msra.mxu0 %v551
    %743 = vmatprep.subr.bf16.mxu0 0
    %744 = vmatpush1.bf16.msra.mxu0 %v552
    %745 = vmatprep.subr.bf16.mxu0 0
    %746 = vmatpush1.bf16.msra.mxu0 %v553
    %747 = vmatprep.subr.bf16.mxu0 0
    %748 = vmatpush1.bf16.msra.mxu0 %v554
    %749 = vmatprep.subr.bf16.mxu0 0
    %750 = vmatpush1.bf16.msra.mxu0 %v555
    %751 = vmatprep.subr.bf16.mxu0 0
    %752 = vmatpush1.bf16.msra.mxu0 %v556
    %753 = vmatprep.subr.bf16.mxu0 0
    %754 = vmatpush1.bf16.msra.mxu0 0
    %755 = vmatprep.subr.bf16.mxu0 0
    %756 = vmatpush1.bf16.msra.mxu0 0
    %757 = vmatprep.subr.bf16.mxu0 0
    %758 = vmatpush1.bf16.msra.mxu0 0
    %759 = vmatprep.subr.bf16.mxu0 0
    %760 = vmatpush1.bf16.msra.mxu0 0
    %761 = vmatprep.subr.bf16.mxu0 0
    %762 = vmatpush1.bf16.msra.mxu0 0
    %763 = vmatprep.subr.bf16.mxu0 0
    %764 = vmatpush1.bf16.msra.mxu0 0
    %765 = vmatprep.subr.bf16.mxu0 0
    %766 = vmatpush1.bf16.msra.mxu0 0
    %767 = vmatprep.subr.bf16.mxu0 0
    %768 = vmatpush1.bf16.msra.mxu0 0
    %769 = vmatprep.mubr.bf16.mxu0 0
    %770 = vmatmul.mubr.bf16.gmra.mrb[0].mxu0 %v736
    %v771 = vpop.f32.mrb[0].mxu0
    %v772 = vadd.f32 0.0, %v771
    %v773 = vpop.f32.mrb[0].mxu0
    %v774 = vpop.f32.mrb[0].mxu0
    %v775 = vpop.f32.mrb[0].mxu0
    %776 = vdwg.mxu0
    %v777 = vadd.f32 %v301, %v772
    %v778 = vtanh.pop %v777
    %v779 = vpack.c.bf16 %v778, %v778
    %780 = vmatprep.subr.bf16.mxu0 0
    %781 = vmatpush1.bf16.msra.mxu0 %v549
    %782 = vmatprep.subr.bf16.mxu0 0
    %783 = vmatpush1.bf16.msra.mxu0 %v550
    %784 = vmatprep.subr.bf16.mxu0 0
    %785 = vmatpush1.bf16.msra.mxu0 %v551
    %786 = vmatprep.subr.bf16.mxu0 0
    %787 = vmatpush1.bf16.msra.mxu0 %v552
    %788 = vmatprep.subr.bf16.mxu0 0
    %789 = vmatpush1.bf16.msra.mxu0 %v553
    %790 = vmatprep.subr.bf16.mxu0 0
    %791 = vmatpush1.bf16.msra.mxu0 %v554
    %792 = vmatprep.subr.bf16.mxu0 0
    %793 = vmatpush1.bf16.msra.mxu0 %v555
    %794 = vmatprep.subr.bf16.mxu0 0
    %795 = vmatpush1.bf16.msra.mxu0 %v556
    %796 = vmatprep.subr.bf16.mxu0 0
    %797 = vmatpush1.bf16.msra.mxu0 0
    %798 = vmatprep.subr.bf16.mxu0 0
    %799 = vmatpush1.bf16.msra.mxu0 0
    %800 = vmatprep.subr.bf16.mxu0 0
    %801 = vmatpush1.bf16.msra.mxu0 0
    %802 = vmatprep.subr.bf16.mxu0 0
    %803 = vmatpush1.bf16.msra.mxu0 0
    %804 = vmatprep.subr.bf16.mxu0 0
    %805 = vmatpush1.bf16.msra.mxu0 0
    %806 = vmatprep.subr.bf16.mxu0 0
    %807 = vmatpush1.bf16.msra.mxu0 0
    %808 = vmatprep.subr.bf16.mxu0 0
    %809 = vmatpush1.bf16.msra.mxu0 0
    %810 = vmatprep.subr.bf16.mxu0 0
    %811 = vmatpush1.bf16.msra.mxu0 0
    %812 = vmatprep.mubr.bf16.mxu0 0
    %813 = vmatmul.mubr.bf16.gmra.mrb[0].mxu0 %v779
    %v814 = vpop.f32.mrb[0].mxu0
    %v815 = vadd.f32 0.0, %v814
    %v816 = vpop.f32.mrb[0].mxu0
    %v817 = vpop.f32.mrb[0].mxu0
    %v818 = vpop.f32.mrb[0].mxu0
    %819 = vdwg.mxu0
    %v820 = vadd.f32 %v304, %v815
    %v821 = vtanh.pop %v820
    %v822 = vpack.c.bf16 %v821, %v821
    %823 = vmatprep.subr.bf16.mxu0 0
    %824 = vmatpush1.bf16.msra.mxu0 %v549
    %825 = vmatprep.subr.bf16.mxu0 0
    %826 = vmatpush1.bf16.msra.mxu0 %v550
    %827 = vmatprep.subr.bf16.mxu0 0
    %828 = vmatpush1.bf16.msra.mxu0 %v551
    %829 = vmatprep.subr.bf16.mxu0 0
    %830 = vmatpush1.bf16.msra.mxu0 %v552
    %831 = vmatprep.subr.bf16.mxu0 0
    %832 = vmatpush1.bf16.msra.mxu0 %v553
    %833 = vmatprep.subr.bf16.mxu0 0
    %834 = vmatpush1.bf16.msra.mxu0 %v554
    %835 = vmatprep.subr.bf16.mxu0 0
    %836 = vmatpush1.bf16.msra.mxu0 %v555
    %837 = vmatprep.subr.bf16.mxu0 0
    %838 = vmatpush1.bf16.msra.mxu0 %v556
    %839 = vmatprep.subr.bf16.mxu0 0
    %840 = vmatpush1.bf16.msra.mxu0 0
    %841 = vmatprep.subr.bf16.mxu0 0
    %842 = vmatpush1.bf16.msra.mxu0 0
    %843 = vmatprep.subr.bf16.mxu0 0
    %844 = vmatpush1.bf16.msra.mxu0 0
    %845 = vmatprep.subr.bf16.mxu0 0
    %846 = vmatpush1.bf16.msra.mxu0 0
    %847 = vmatprep.subr.bf16.mxu0 0
    %848 = vmatpush1.bf16.msra.mxu0 0
    %849 = vmatprep.subr.bf16.mxu0 0
    %850 = vmatpush1.bf16.msra.mxu0 0
    %851 = vmatprep.subr.bf16.mxu0 0
    %852 = vmatpush1.bf16.msra.mxu0 0
    %853 = vmatprep.subr.bf16.mxu0 0
    %854 = vmatpush1.bf16.msra.mxu0 0
    %855 = vmatprep.mubr.bf16.mxu0 0
    %856 = vmatmul.mubr.bf16.gmra.mrb[0].mxu0 %v822
    %v857 = vpop.f32.mrb[0].mxu0
    %v858 = vadd.f32 0.0, %v857
    %v859 = vpop.f32.mrb[0].mxu0
    %v860 = vpop.f32.mrb[0].mxu0
    %v861 = vpop.f32.mrb[0].mxu0
    %862 = vdwg.mxu0
    %v863 = vadd.f32 %v309, %v858
    %v864 = vtanh.pop %v863
    %v865 = vpack.c.bf16 %v864, %v864
    %866 = vmatprep.subr.bf16.mxu0 0
    %867 = vmatpush1.bf16.msra.mxu0 %v549
    %868 = vmatprep.subr.bf16.mxu0 0
    %869 = vmatpush1.bf16.msra.mxu0 %v550
    %870 = vmatprep.subr.bf16.mxu0 0
    %871 = vmatpush1.bf16.msra.mxu0 %v551
    %872 = vmatprep.subr.bf16.mxu0 0
    %873 = vmatpush1.bf16.msra.mxu0 %v552
    %874 = vmatprep.subr.bf16.mxu0 0
    %875 = vmatpush1.bf16.msra.mxu0 %v553
    %876 = vmatprep.subr.bf16.mxu0 0
    %877 = vmatpush1.bf16.msra.mxu0 %v554
    %878 = vmatprep.subr.bf16.mxu0 0
    %879 = vmatpush1.bf16.msra.mxu0 %v555
    %880 = vmatprep.subr.bf16.mxu0 0
    %881 = vmatpush1.bf16.msra.mxu0 %v556
    %882 = vmatprep.subr.bf16.mxu0 0
    %883 = vmatpush1.bf16.msra.mxu0 0
    %884 = vmatprep.subr.bf16.mxu0 0
    %885 = vmatpush1.bf16.msra.mxu0 0
    %886 = vmatprep.subr.bf16.mxu0 0
    %887 = vmatpush1.bf16.msra.mxu0 0
    %888 = vmatprep.subr.bf16.mxu0 0
    %889 = vmatpush1.bf16.msra.mxu0 0
    %890 = vmatprep.subr.bf16.mxu0 0
    %891 = vmatpush1.bf16.msra.mxu0 0
    %892 = vmatprep.subr.bf16.mxu0 0
    %893 = vmatpush1.bf16.msra.mxu0 0
    %894 = vmatprep.subr.bf16.mxu0 0
    %895 = vmatpush1.bf16.msra.mxu0 0
    %896 = vmatprep.subr.bf16.mxu0 0
    %897 = vmatpush1.bf16.msra.mxu0 0
    %898 = vmatprep.mubr.bf16.mxu0 0
    %899 = vmatmul.mubr.bf16.gmra.mrb[0].mxu0 %v865
    %v900 = vpop.f32.mrb[0].mxu0
    %v901 = vadd.f32 0.0, %v900
    %v902 = vpop.f32.mrb[0].mxu0
    %v903 = vpop.f32.mrb[0].mxu0
    %v904 = vpop.f32.mrb[0].mxu0
    %905 = vdwg.mxu0
    %v906 = vadd.f32 %v312, %v901
    %v907 = vtanh.pop %v906
    %v908 = vpack.c.bf16 %v907, %v907
    %v925 = vunpack.c.l.b16 %v499
    %v926 = vunpack.c.l.b16 %v500
    %v927 = vunpack.c.l.b16 %v501
    %v928 = vunpack.c.l.b16 %v502
    %v929 = vunpack.c.l.b16 %v503
    %v930 = vunpack.c.l.b16 %v504
    %v931 = vunpack.c.l.b16 %v505
    %v932 = vunpack.c.l.b16 %v506
    %v933 = vunpack.c.l.b16 %v507
    %v934 = vunpack.c.l.b16 %v508
    %v935 = vunpack.c.l.b16 %v509
    %v936 = vunpack.c.l.b16 %v510
    %v937 = vunpack.c.l.b16 %v511
    %v938 = vunpack.c.l.b16 %v512
    %v939 = vunpack.c.l.b16 %v513
    %v940 = vunpack.c.l.b16 %v514
    %v941 = vpack.c.b16 %v926, %v925
    %v942 = vpack.c.b16 %v928, %v927
    %v943 = vpack.c.b16 %v930, %v929
    %v944 = vpack.c.b16 %v932, %v931
    %v945 = vpack.c.b16 %v934, %v933
    %v946 = vpack.c.b16 %v936, %v935
    %v947 = vpack.c.b16 %v938, %v937
    %v948 = vpack.c.b16 %v940, %v939
    %957 = vmatprep.subr.bf16.mxu0 0
    %958 = vmatpush1.bf16.msra.mxu0 %v941
    %959 = vmatprep.subr.bf16.mxu0 0
    %960 = vmatpush1.bf16.msra.mxu0 %v942
    %961 = vmatprep.subr.bf16.mxu0 0
    %962 = vmatpush1.bf16.msra.mxu0 %v943
    %963 = vmatprep.subr.bf16.mxu0 0
    %964 = vmatpush1.bf16.msra.mxu0 %v944
    %965 = vmatprep.subr.bf16.mxu0 0
    %966 = vmatpush1.bf16.msra.mxu0 %v945
    %967 = vmatprep.subr.bf16.mxu0 0
    %968 = vmatpush1.bf16.msra.mxu0 %v946
    %969 = vmatprep.subr.bf16.mxu0 0
    %970 = vmatpush1.bf16.msra.mxu0 %v947
    %971 = vmatprep.subr.bf16.mxu0 0
    %972 = vmatpush1.bf16.msra.mxu0 %v948
    %973 = vmatprep.subr.bf16.mxu0 0
    %974 = vmatpush1.bf16.msra.mxu0 0
    %975 = vmatprep.subr.bf16.mxu0 0
    %976 = vmatpush1.bf16.msra.mxu0 0
    %977 = vmatprep.subr.bf16.mxu0 0
    %978 = vmatpush1.bf16.msra.mxu0 0
    %979 = vmatprep.subr.bf16.mxu0 0
    %980 = vmatpush1.bf16.msra.mxu0 0
    %981 = vmatprep.subr.bf16.mxu0 0
    %982 = vmatpush1.bf16.msra.mxu0 0
    %983 = vmatprep.subr.bf16.mxu0 0
    %984 = vmatpush1.bf16.msra.mxu0 0
    %985 = vmatprep.subr.bf16.mxu0 0
    %986 = vmatpush1.bf16.msra.mxu0 0
    %987 = vmatprep.subr.bf16.mxu0 0
    %988 = vmatpush1.bf16.msra.mxu0 0
    %989 = vmatprep.mubr.bf16.mxu0 0
    %990 = vmatmul.mubr.bf16.gmra.mrb[0].mxu0 %v908
    %v991 = vpop.f32.mrb[0].mxu0
    %v992 = vadd.f32 0.0, %v991
    %v993 = vpop.f32.mrb[0].mxu0
    %v994 = vpop.f32.mrb[0].mxu0
    %v995 = vpop.f32.mrb[0].mxu0
    %996 = vdwg.mxu0
    %v997 = vadd.f32 %v453, %v992
    %v998 = vtanh.pop %v997
    %v999 = vpack.c.bf16 %v998, %v998
    %1000 = vmatprep.subr.bf16.mxu0 0
    %1001 = vmatpush1.bf16.msra.mxu0 %v941
    %1002 = vmatprep.subr.bf16.mxu0 0
    %1003 = vmatpush1.bf16.msra.mxu0 %v942
    %1004 = vmatprep.subr.bf16.mxu0 0
    %1005 = vmatpush1.bf16.msra.mxu0 %v943
    %1006 = vmatprep.subr.bf16.mxu0 0
    %1007 = vmatpush1.bf16.msra.mxu0 %v944
    %1008 = vmatprep.subr.bf16.mxu0 0
    %1009 = vmatpush1.bf16.msra.mxu0 %v945
    %1010 = vmatprep.subr.bf16.mxu0 0
    %1011 = vmatpush1.bf16.msra.mxu0 %v946
    %1012 = vmatprep.subr.bf16.mxu0 0
    %1013 = vmatpush1.bf16.msra.mxu0 %v947
    %1014 = vmatprep.subr.bf16.mxu0 0
    %1015 = vmatpush1.bf16.msra.mxu0 %v948
    %1016 = vmatprep.subr.bf16.mxu0 0
    %1017 = vmatpush1.bf16.msra.mxu0 0
    %1018 = vmatprep.subr.bf16.mxu0 0
    %1019 = vmatpush1.bf16.msra.mxu0 0
    %1020 = vmatprep.subr.bf16.mxu0 0
    %1021 = vmatpush1.bf16.msra.mxu0 0
    %1022 = vmatprep.subr.bf16.mxu0 0
    %1023 = vmatpush1.bf16.msra.mxu0 0
    %1024 = vmatprep.subr.bf16.mxu0 0
    %1025 = vmatpush1.bf16.msra.mxu0 0
    %1026 = vmatprep.subr.bf16.mxu0 0
    %1027 = vmatpush1.bf16.msra.mxu0 0
    %1028 = vmatprep.subr.bf16.mxu0 0
    %1029 = vmatpush1.bf16.msra.mxu0 0
    %1030 = vmatprep.subr.bf16.mxu0 0
    %1031 = vmatpush1.bf16.msra.mxu0 0
    %1032 = vmatprep.mubr.bf16.mxu0 0
    %1033 = vmatmul.mubr.bf16.gmra.mrb[0].mxu0 %v999
    %v1034 = vpop.f32.mrb[0].mxu0
    %v1035 = vadd.f32 0.0, %v1034
    %v1036 = vpop.f32.mrb[0].mxu0
    %v1037 = vpop.f32.mrb[0].mxu0
    %v1038 = vpop.f32.mrb[0].mxu0
    %1039 = vdwg.mxu0
    %v1040 = vadd.f32 %v456, %v1035
    %v1041 = vtanh.pop %v1040
    %v1042 = vpack.c.bf16 %v1041, %v1041
    %1043 = vmatprep.subr.bf16.mxu0 0
    %1044 = vmatpush1.bf16.msra.mxu0 %v941
    %1045 = vmatprep.subr.bf16.mxu0 0
    %1046 = vmatpush1.bf16.msra.mxu0 %v942
    %1047 = vmatprep.subr.bf16.mxu0 0
    %1048 = vmatpush1.bf16.msra.mxu0 %v943
    %1049 = vmatprep.subr.bf16.mxu0 0
    %1050 = vmatpush1.bf16.msra.mxu0 %v944
    %1051 = vmatprep.subr.bf16.mxu0 0
    %1052 = vmatpush1.bf16.msra.mxu0 %v945
    %1053 = vmatprep.subr.bf16.mxu0 0
    %1054 = vmatpush1.bf16.msra.mxu0 %v946
    %1055 = vmatprep.subr.bf16.mxu0 0
    %1056 = vmatpush1.bf16.msra.mxu0 %v947
    %1057 = vmatprep.subr.bf16.mxu0 0
    %1058 = vmatpush1.bf16.msra.mxu0 %v948
    %1059 = vmatprep.subr.bf16.mxu0 0
    %1060 = vmatpush1.bf16.msra.mxu0 0
    %1061 = vmatprep.subr.bf16.mxu0 0
    %1062 = vmatpush1.bf16.msra.mxu0 0
    %1063 = vmatprep.subr.bf16.mxu0 0
    %1064 = vmatpush1.bf16.msra.mxu0 0
    %1065 = vmatprep.subr.bf16.mxu0 0
    %1066 = vmatpush1.bf16.msra.mxu0 0
    %1067 = vmatprep.subr.bf16.mxu0 0
    %1068 = vmatpush1.bf16.msra.mxu0 0
    %1069 = vmatprep.subr.bf16.mxu0 0
    %1070 = vmatpush1.bf16.msra.mxu0 0
    %1071 = vmatprep.subr.bf16.mxu0 0
    %1072 = vmatpush1.bf16.msra.mxu0 0
    %1073 = vmatprep.subr.bf16.mxu0 0
    %1074 = vmatpush1.bf16.msra.mxu0 0
    %1075 = vmatprep.mubr.bf16.mxu0 0
    %1076 = vmatmul.mubr.bf16.gmra.mrb[0].mxu0 %v1042
    %v1077 = vpop.f32.mrb[0].mxu0
    %v1078 = vadd.f32 0.0, %v1077
    %v1079 = vpop.f32.mrb[0].mxu0
    %v1080 = vpop.f32.mrb[0].mxu0
    %v1081 = vpop.f32.mrb[0].mxu0
    %1082 = vdwg.mxu0
    %v1083 = vadd.f32 %v461, %v1078
    %v1084 = vtanh.pop %v1083
    %v1085 = vpack.c.bf16 %v1084, %v1084
    %1086 = vmatprep.subr.bf16.mxu0 0
    %1087 = vmatpush1.bf16.msra.mxu0 %v941
    %1088 = vmatprep.subr.bf16.mxu0 0
    %1089 = vmatpush1.bf16.msra.mxu0 %v942
    %1090 = vmatprep.subr.bf16.mxu0 0
    %1091 = vmatpush1.bf16.msra.mxu0 %v943
    %1092 = vmatprep.subr.bf16.mxu0 0
    %1093 = vmatpush1.bf16.msra.mxu0 %v944
    %1094 = vmatprep.subr.bf16.mxu0 0
    %1095 = vmatpush1.bf16.msra.mxu0 %v945
    %1096 = vmatprep.subr.bf16.mxu0 0
    %1097 = vmatpush1.bf16.msra.mxu0 %v946
    %1098 = vmatprep.subr.bf16.mxu0 0
    %1099 = vmatpush1.bf16.msra.mxu0 %v947
    %1100 = vmatprep.subr.bf16.mxu0 0
    %1101 = vmatpush1.bf16.msra.mxu0 %v948
    %1102 = vmatprep.subr.bf16.mxu0 0
    %1103 = vmatpush1.bf16.msra.mxu0 0
    %1104 = vmatprep.subr.bf16.mxu0 0
    %1105 = vmatpush1.bf16.msra.mxu0 0
    %1106 = vmatprep.subr.bf16.mxu0 0
    %1107 = vmatpush1.bf16.msra.mxu0 0
    %1108 = vmatprep.subr.bf16.mxu0 0
    %1109 = vmatpush1.bf16.msra.mxu0 0
    %1110 = vmatprep.subr.bf16.mxu0 0
    %1111 = vmatpush1.bf16.msra.mxu0 0
    %1112 = vmatprep.subr.bf16.mxu0 0
    %1113 = vmatpush1.bf16.msra.mxu0 0
    %1114 = vmatprep.subr.bf16.mxu0 0
    %1115 = vmatpush1.bf16.msra.mxu0 0
    %1116 = vmatprep.subr.bf16.mxu0 0
    %1117 = vmatpush1.bf16.msra.mxu0 0
    %1118 = vmatprep.mubr.bf16.mxu0 0
    %1119 = vmatmul.mubr.bf16.gmra.mrb[0].mxu0 %v1085
    %v1120 = vpop.f32.mrb[0].mxu0
    %v1121 = vadd.f32 0.0, %v1120
    %v1122 = vpop.f32.mrb[0].mxu0
    %v1123 = vpop.f32.mrb[0].mxu0
    %v1124 = vpop.f32.mrb[0].mxu0
    %1125 = vdwg.mxu0
    %v1126 = vadd.f32 %v464, %v1121
    %v1127 = vtanh.pop %v1126
    %v1128 = vpack.c.bf16 %v1127, %v1127
    %1129 = vmatprep.subr.bf16.mxu0 0
    %1130 = vmatpush1.bf16.msra.mxu0 %v941
    %1131 = vmatprep.subr.bf16.mxu0 0
    %1132 = vmatpush1.bf16.msra.mxu0 %v942
    %1133 = vmatprep.subr.bf16.mxu0 0
    %1134 = vmatpush1.bf16.msra.mxu0 %v943
    %1135 = vmatprep.subr.bf16.mxu0 0
    %1136 = vmatpush1.bf16.msra.mxu0 %v944
    %1137 = vmatprep.subr.bf16.mxu0 0
    %1138 = vmatpush1.bf16.msra.mxu0 %v945
    %1139 = vmatprep.subr.bf16.mxu0 0
    %1140 = vmatpush1.bf16.msra.mxu0 %v946
    %1141 = vmatprep.subr.bf16.mxu0 0
    %1142 = vmatpush1.bf16.msra.mxu0 %v947
    %1143 = vmatprep.subr.bf16.mxu0 0
    %1144 = vmatpush1.bf16.msra.mxu0 %v948
    %1145 = vmatprep.subr.bf16.mxu0 0
    %1146 = vmatpush1.bf16.msra.mxu0 0
    %1147 = vmatprep.subr.bf16.mxu0 0
    %1148 = vmatpush1.bf16.msra.mxu0 0
    %1149 = vmatprep.subr.bf16.mxu0 0
    %1150 = vmatpush1.bf16.msra.mxu0 0
    %1151 = vmatprep.subr.bf16.mxu0 0
    %1152 = vmatpush1.bf16.msra.mxu0 0
    %1153 = vmatprep.subr.bf16.mxu0 0
    %1154 = vmatpush1.bf16.msra.mxu0 0
    %1155 = vmatprep.subr.bf16.mxu0 0
    %1156 = vmatpush1.bf16.msra.mxu0 0
    %1157 = vmatprep.subr.bf16.mxu0 0
    %1158 = vmatpush1.bf16.msra.mxu0 0
    %1159 = vmatprep.subr.bf16.mxu0 0
    %1160 = vmatpush1.bf16.msra.mxu0 0
    %1161 = vmatprep.mubr.bf16.mxu0 0
    %1162 = vmatmul.mubr.bf16.gmra.mrb[0].mxu0 %v1128
    %v1163 = vpop.f32.mrb[0].mxu0
    %v1164 = vadd.f32 0.0, %v1163
    %v1165 = vpop.f32.mrb[0].mxu0
    %v1166 = vpop.f32.mrb[0].mxu0
    %v1167 = vpop.f32.mrb[0].mxu0
    %1168 = vdwg.mxu0
    %v1169 = vadd.f32 %v469, %v1164
    %v1170 = vtanh.pop %v1169
    %v1171 = vpack.c.bf16 %v1170, %v1170
    %1172 = vmatprep.subr.bf16.mxu0 0
    %1173 = vmatpush1.bf16.msra.mxu0 %v941
    %1174 = vmatprep.subr.bf16.mxu0 0
    %1175 = vmatpush1.bf16.msra.mxu0 %v942
    %1176 = vmatprep.subr.bf16.mxu0 0
    %1177 = vmatpush1.bf16.msra.mxu0 %v943
    %1178 = vmatprep.subr.bf16.mxu0 0
    %1179 = vmatpush1.bf16.msra.mxu0 %v944
    %1180 = vmatprep.subr.bf16.mxu0 0
    %1181 = vmatpush1.bf16.msra.mxu0 %v945
    %1182 = vmatprep.subr.bf16.mxu0 0
    %1183 = vmatpush1.bf16.msra.mxu0 %v946
    %1184 = vmatprep.subr.bf16.mxu0 0
    %1185 = vmatpush1.bf16.msra.mxu0 %v947
    %1186 = vmatprep.subr.bf16.mxu0 0
    %1187 = vmatpush1.bf16.msra.mxu0 %v948
    %1188 = vmatprep.subr.bf16.mxu0 0
    %1189 = vmatpush1.bf16.msra.mxu0 0
    %1190 = vmatprep.subr.bf16.mxu0 0
    %1191 = vmatpush1.bf16.msra.mxu0 0
    %1192 = vmatprep.subr.bf16.mxu0 0
    %1193 = vmatpush1.bf16.msra.mxu0 0
    %1194 = vmatprep.subr.bf16.mxu0 0
    %1195 = vmatpush1.bf16.msra.mxu0 0
    %1196 = vmatprep.subr.bf16.mxu0 0
    %1197 = vmatpush1.bf16.msra.mxu0 0
    %1198 = vmatprep.subr.bf16.mxu0 0
    %1199 = vmatpush1.bf16.msra.mxu0 0
    %1200 = vmatprep.subr.bf16.mxu0 0
    %1201 = vmatpush1.bf16.msra.mxu0 0
    %1202 = vmatprep.subr.bf16.mxu0 0
    %1203 = vmatpush1.bf16.msra.mxu0 0
    %1204 = vmatprep.mubr.bf16.mxu0 0
    %1205 = vmatmul.mubr.bf16.gmra.mrb[0].mxu0 %v1171
    %v1206 = vpop.f32.mrb[0].mxu0
    %v1207 = vadd.f32 0.0, %v1206
    %v1208 = vpop.f32.mrb[0].mxu0
    %v1209 = vpop.f32.mrb[0].mxu0
    %v1210 = vpop.f32.mrb[0].mxu0
    %1211 = vdwg.mxu0
    %v1212 = vadd.f32 %v472, %v1207
    %v1213 = vtanh.pop %v1212
    %v1214 = vpack.c.bf16 %v1213, %v1213
    %1215 = vmatprep.subr.bf16.mxu0 0
    %1216 = vmatpush1.bf16.msra.mxu0 %v941
    %1217 = vmatprep.subr.bf16.mxu0 0
    %1218 = vmatpush1.bf16.msra.mxu0 %v942
    %1219 = vmatprep.subr.bf16.mxu0 0
    %1220 = vmatpush1.bf16.msra.mxu0 %v943
    %1221 = vmatprep.subr.bf16.mxu0 0
    %1222 = vmatpush1.bf16.msra.mxu0 %v944
    %1223 = vmatprep.subr.bf16.mxu0 0
    %1224 = vmatpush1.bf16.msra.mxu0 %v945
    %1225 = vmatprep.subr.bf16.mxu0 0
    %1226 = vmatpush1.bf16.msra.mxu0 %v946
    %1227 = vmatprep.subr.bf16.mxu0 0
    %1228 = vmatpush1.bf16.msra.mxu0 %v947
    %1229 = vmatprep.subr.bf16.mxu0 0
    %1230 = vmatpush1.bf16.msra.mxu0 %v948
    %1231 = vmatprep.subr.bf16.mxu0 0
    %1232 = vmatpush1.bf16.msra.mxu0 0
    %1233 = vmatprep.subr.bf16.mxu0 0
    %1234 = vmatpush1.bf16.msra.mxu0 0
    %1235 = vmatprep.subr.bf16.mxu0 0
    %1236 = vmatpush1.bf16.msra.mxu0 0
    %1237 = vmatprep.subr.bf16.mxu0 0
    %1238 = vmatpush1.bf16.msra.mxu0 0
    %1239 = vmatprep.subr.bf16.mxu0 0
    %1240 = vmatpush1.bf16.msra.mxu0 0
    %1241 = vmatprep.subr.bf16.mxu0 0
    %1242 = vmatpush1.bf16.msra.mxu0 0
    %1243 = vmatprep.subr.bf16.mxu0 0
    %1244 = vmatpush1.bf16.msra.mxu0 0
    %1245 = vmatprep.subr.bf16.mxu0 0
    %1246 = vmatpush1.bf16.msra.mxu0 0
    %1247 = vmatprep.mubr.bf16.mxu0 0
    %1248 = vmatmul.mubr.bf16.gmra.mrb[0].mxu0 %v1214
    %v1249 = vpop.f32.mrb[0].mxu0
    %v1250 = vadd.f32 0.0, %v1249
    %v1251 = vpop.f32.mrb[0].mxu0
    %v1252 = vpop.f32.mrb[0].mxu0
    %v1253 = vpop.f32.mrb[0].mxu0
    %1254 = vdwg.mxu0
    %v1255 = vadd.f32 %v477, %v1250
    %v1256 = vtanh.pop %v1255
    %v1257 = vpack.c.bf16 %v1256, %v1256
    %1258 = vmatprep.subr.bf16.mxu0 0
    %1259 = vmatpush1.bf16.msra.mxu0 %v941
    %1260 = vmatprep.subr.bf16.mxu0 0
    %1261 = vmatpush1.bf16.msra.mxu0 %v942
    %1262 = vmatprep.subr.bf16.mxu0 0
    %1263 = vmatpush1.bf16.msra.mxu0 %v943
    %1264 = vmatprep.subr.bf16.mxu0 0
    %1265 = vmatpush1.bf16.msra.mxu0 %v944
    %1266 = vmatprep.subr.bf16.mxu0 0
    %1267 = vmatpush1.bf16.msra.mxu0 %v945
    %1268 = vmatprep.subr.bf16.mxu0 0
    %1269 = vmatpush1.bf16.msra.mxu0 %v946
    %1270 = vmatprep.subr.bf16.mxu0 0
    %1271 = vmatpush1.bf16.msra.mxu0 %v947
    %1272 = vmatprep.subr.bf16.mxu0 0
    %1273 = vmatpush1.bf16.msra.mxu0 %v948
    %1274 = vmatprep.subr.bf16.mxu0 0
    %1275 = vmatpush1.bf16.msra.mxu0 0
    %1276 = vmatprep.subr.bf16.mxu0 0
    %1277 = vmatpush1.bf16.msra.mxu0 0
    %1278 = vmatprep.subr.bf16.mxu0 0
    %1279 = vmatpush1.bf16.msra.mxu0 0
    %1280 = vmatprep.subr.bf16.mxu0 0
    %1281 = vmatpush1.bf16.msra.mxu0 0
    %1282 = vmatprep.subr.bf16.mxu0 0
    %1283 = vmatpush1.bf16.msra.mxu0 0
    %1284 = vmatprep.subr.bf16.mxu0 0
    %1285 = vmatpush1.bf16.msra.mxu0 0
    %1286 = vmatprep.subr.bf16.mxu0 0
    %1287 = vmatpush1.bf16.msra.mxu0 0
    %1288 = vmatprep.subr.bf16.mxu0 0
    %1289 = vmatpush1.bf16.msra.mxu0 0
    %1290 = vmatprep.mubr.bf16.mxu0 0
    %1291 = vmatmul.mubr.bf16.gmra.mrb[0].mxu0 %v1257
    %v1292 = vpop.f32.mrb[0].mxu0
    %v1293 = vadd.f32 0.0, %v1292
    %v1294 = vpop.f32.mrb[0].mxu0
    %v1295 = vpop.f32.mrb[0].mxu0
    %v1296 = vpop.f32.mrb[0].mxu0
    %1297 = vdwg.mxu0
    %v1298 = vadd.f32 %v480, %v1293
    %v1299 = vtanh.pop %v1298
    %v1300 = vpack.c.bf16 %v1041, %v998
    %v1301 = vpack.c.bf16 %v1127, %v1084
    %v1302 = vpack.c.bf16 %v1213, %v1170
    %v1303 = vpack.c.bf16 %v1299, %v1256
    %v1304 = vld [vmem:[#allocation14] sm:$0xf]
    %v1305 = vld [vmem:[#allocation14 + $0x4] sm:$0xf]
    %v1306 = vld [vmem:[#allocation14 + $0x8] sm:$0xf]
    %v1307 = vld [vmem:[#allocation14 + $0xc] sm:$0xf]
    %v1308 = vld [vmem:[#allocation14 + $0x10] sm:$0xf]
    %v1309 = vld [vmem:[#allocation14 + $0x14] sm:$0xf]
    %v1310 = vld [vmem:[#allocation14 + $0x18] sm:$0xf]
    %v1311 = vld [vmem:[#allocation14 + $0x1c] sm:$0xf]
    %v1312 = vld [vmem:[#allocation14 + $0x20] sm:$0xf]
    %v1313 = vld [vmem:[#allocation14 + $0x24] sm:$0xf]
    %v1314 = vld [vmem:[#allocation14 + $0x28] sm:$0xf]
    %v1315 = vld [vmem:[#allocation14 + $0x2c] sm:$0xf]
    %v1316 = vld [vmem:[#allocation14 + $0x30] sm:$0xf]
    %v1317 = vld [vmem:[#allocation14 + $0x34] sm:$0xf]
    %v1318 = vld [vmem:[#allocation14 + $0x38] sm:$0xf]
    %v1319 = vld [vmem:[#allocation14 + $0x3c] sm:$0xf]
    %v1320 = vld [vmem:[%s10] sm:$0x1]
    %v1322 = vlaneseq
    %v1323 = vshrl.u32 %v1322, 7
    %v1324 = vsub.s32 0, %v1323
    %v1325 = vrot.slane %v1320, %v1324
    %v1343 = vunpack.c.l.b16 %v1304
    %v1344 = vunpack.c.l.b16 %v1305
    %v1345 = vunpack.c.l.b16 %v1306
    %v1346 = vunpack.c.l.b16 %v1307
    %v1347 = vunpack.c.l.b16 %v1308
    %v1348 = vunpack.c.l.b16 %v1309
    %v1349 = vunpack.c.l.b16 %v1310
    %v1350 = vunpack.c.l.b16 %v1311
    %v1351 = vunpack.c.l.b16 %v1312
    %v1352 = vunpack.c.l.b16 %v1313
    %v1353 = vunpack.c.l.b16 %v1314
    %v1354 = vunpack.c.l.b16 %v1315
    %v1355 = vunpack.c.l.b16 %v1316
    %v1356 = vunpack.c.l.b16 %v1317
    %v1357 = vunpack.c.l.b16 %v1318
    %v1358 = vunpack.c.l.b16 %v1319
    %v1359 = vpack.c.b16 %v1344, %v1343
    %v1360 = vpack.c.b16 %v1346, %v1345
    %v1361 = vpack.c.b16 %v1348, %v1347
    %v1362 = vpack.c.b16 %v1350, %v1349
    %v1363 = vpack.c.b16 %v1352, %v1351
    %v1364 = vpack.c.b16 %v1354, %v1353
    %v1365 = vpack.c.b16 %v1356, %v1355
    %v1366 = vpack.c.b16 %v1358, %v1357
    %1375 = vmatprep.subr.bf16.mxu0 0
    %1376 = vmatpush1.bf16.msra.mxu0 %v1359
    %1377 = vmatprep.subr.bf16.mxu0 0
    %1378 = vmatpush1.bf16.msra.mxu0 %v1360
    %1379 = vmatprep.subr.bf16.mxu0 0
    %1380 = vmatpush1.bf16.msra.mxu0 %v1361
    %1381 = vmatprep.subr.bf16.mxu0 0
    %1382 = vmatpush1.bf16.msra.mxu0 %v1362
    %1383 = vmatprep.subr.bf16.mxu0 0
    %1384 = vmatpush1.bf16.msra.mxu0 %v1363
    %1385 = vmatprep.subr.bf16.mxu0 0
    %1386 = vmatpush1.bf16.msra.mxu0 %v1364
    %1387 = vmatprep.subr.bf16.mxu0 0
    %1388 = vmatpush1.bf16.msra.mxu0 %v1365
    %1389 = vmatprep.subr.bf16.mxu0 0
    %1390 = vmatpush1.bf16.msra.mxu0 %v1366
    %1391 = vmatprep.subr.bf16.mxu0 0
    %1392 = vmatpush1.bf16.msra.mxu0 0
    %1393 = vmatprep.subr.bf16.mxu0 0
    %1394 = vmatpush1.bf16.msra.mxu0 0
    %1395 = vmatprep.subr.bf16.mxu0 0
    %1396 = vmatpush1.bf16.msra.mxu0 0
    %1397 = vmatprep.subr.bf16.mxu0 0
    %1398 = vmatpush1.bf16.msra.mxu0 0
    %1399 = vmatprep.subr.bf16.mxu0 0
    %1400 = vmatpush1.bf16.msra.mxu0 0
    %1401 = vmatprep.subr.bf16.mxu0 0
    %1402 = vmatpush1.bf16.msra.mxu0 0
    %1403 = vmatprep.subr.bf16.mxu0 0
    %1404 = vmatpush1.bf16.msra.mxu0 0
    %1405 = vmatprep.subr.bf16.mxu0 0
    %1406 = vmatpush1.bf16.msra.mxu0 0
    %1407 = vmatprep.mubr.bf16.mxu0 0
    %1408 = vmatmul.mubr.bf16.gmra.mrb[0].mxu0 %v1300
    %v1409 = vpop.f32.mrb[0].mxu0
    %v1410 = vadd.f32 %v1325, %v1409
    %v1411 = vpop.f32.mrb[0].mxu0
    %v1412 = vpop.f32.mrb[0].mxu0
    %v1413 = vadd.f32 %v1325, %v1412
    %v1414 = vpop.f32.mrb[0].mxu0
    %1415 = vmatprep.mubr.bf16.mxu0 0
    %1416 = vmatmul.mubr.bf16.gmra.mrb[0].mxu0 %v1301
    %v1417 = vpop.f32.mrb[0].mxu0
    %v1418 = vadd.f32 %v1325, %v1417
    %v1419 = vpop.f32.mrb[0].mxu0
    %v1420 = vpop.f32.mrb[0].mxu0
    %v1421 = vadd.f32 %v1325, %v1420
    %v1422 = vpop.f32.mrb[0].mxu0
    %1423 = vmatprep.mubr.bf16.mxu0 0
    %1424 = vmatmul.mubr.bf16.gmra.mrb[0].mxu0 %v1302
    %v1425 = vpop.f32.mrb[0].mxu0
    %v1426 = vadd.f32 %v1325, %v1425
    %v1427 = vpop.f32.mrb[0].mxu0
    %v1428 = vpop.f32.mrb[0].mxu0
    %v1429 = vadd.f32 %v1325, %v1428
    %v1430 = vpop.f32.mrb[0].mxu0
    %1431 = vmatprep.mubr.bf16.mxu0 0
    %1432 = vmatmul.mubr.bf16.gmra.mrb[0].mxu0 %v1303
    %v1433 = vpop.f32.mrb[0].mxu0
    %v1434 = vadd.f32 %v1325, %v1433
    %v1435 = vpop.f32.mrb[0].mxu0
    %v1436 = vpop.f32.mrb[0].mxu0
    %v1437 = vadd.f32 %v1325, %v1436
    %v1438 = vpop.f32.mrb[0].mxu0
    %1439 = vdwg.mxu0
    %1440 = vst [vmem:[#allocation16] sm:$0xff] %v1410
    %1441 = vst [vmem:[#allocation16 + $0x8] sm:$0xff] %v1413
    %1442 = vst [vmem:[#allocation16 + $0x10] sm:$0xff] %v1418
    %1443 = vst [vmem:[#allocation16 + $0x18] sm:$0xff] %v1421
    %1444 = vst [vmem:[#allocation16 + $0x20] sm:$0xff] %v1426
    %1445 = vst [vmem:[#allocation16 + $0x28] sm:$0xff] %v1429
    %1446 = vst [vmem:[#allocation16 + $0x30] sm:$0xff] %v1434
    %1447 = vst [vmem:[#allocation16 + $0x38] sm:$0xff] %v1437
    // Predicated region
    $region78: #{tpu_custom_call.1} parent=1 // pred_check
      _
    $region79: #{tpu_custom_call.1} parent=1 // pred_check_branch
      %1449 = sbr.rel (0) target = $region81
    $region80: #{tpu_custom_call.1} parent=1 // pred_region
      %s1451 = ssub.s32 1024, 1024
      %1452 = vsyncadd [#allocation4], %s1451
      %s1453 = sshll.u32 [#allocation16], 4
      %s1454 = int_to_ptr.vmem [resolvable:$true] %s1453
      %1459 = dma.vmem_to_hbm [thread:$0]  %s1454, 1024, %s11, [#allocation4], 128, 128, 8
    $region81: #{tpu_custom_call.1} parent=1 // pred_fallthru
      _
    // Predicated region
    $region82: #{tpu_custom_call.1} parent=1 // pred_check
      _
    $region83: #{tpu_custom_call.1} parent=1 // pred_check_branch
      %1461 = sbr.rel (0) target = $region85
    $region84: #{tpu_custom_call.1} parent=1 // pred_region
      %1462 = dma.done [#allocation4], 1024
    $region85: #{tpu_custom_call.1} parent=1 // pred_fallthru
      _
    %1463 = vsyncpa [#allocation3], 1
    %1464 = vsyncpa [#allocation6], 1
    %1465 = vsyncpa [#allocation9], 1
    %1466 = vsyncpa [#allocation12], 1
    %1467 = vsyncpa [#allocation15], 1
    %1468 = vsyncpa [#allocation4], 1

</llo_original>
